<compile_context>
chip_gen: v7x
topology: tpu7x:2x2x1
jax: 0.10.0
libtpu: 0.0.40
codegen_flags: <defaults>
</compile_context>

<pallas_src>
import functools
import math

import jax
import jax.numpy as jnp
from jax.experimental import pallas as pl
from jax.experimental.pallas import tpu as pltpu


def _rup(x, m):
  return ((x + m - 1) // m) * m


def _geo_kernel(
    # streamed / resident inputs
    q_ref,        # (BM, dz_s)  bf16   Q rows of this row block
    kT_ref,       # (dz_s, BN)  bf16   K^T columns of this column block
    noise_ref,    # (BM, BN)    f32    logistic noise tile
    lmcol_ref,    # (1, BN)     f32    1.0 where global column < n1 else 0.0
    allf_col_ref, # (BN, df_p)  f32    all_feature_0 rows for these columns
    allf_row_ref, # (BM, df_p)  f32    all_feature_0 rows of this row block
    w1_ref, b1_ref,            # (df_p, df_p), (1, df_p)
    wm1a_ref, wm1b_ref, bm1_ref,   # pred[0] weights split at the concat
    wm2_ref, bm2_ref,          # (dmed_p, dout_p), (1, dout_p)
    # outputs
    prob_ref,     # (BM, BN)   mask_a_prob tile
    mask_ref,     # (BM, BN)   mask_a_matrix tile
    y_ref,        # (BM, dout_p) y rows (written at last column step)
    # scratch (persist across the column axis)
    agg_acc,      # (BM, df_p) f32
    deg_acc,      # (BM, 1)    f32
    *, inv_temp, bern_temp, logit_hi, num_lm_blocks):
  j = pl.program_id(1)

  @pl.when(j == 0)
  def _init():
    agg_acc[...] = jnp.zeros_like(agg_acc)
    deg_acc[...] = jnp.zeros_like(deg_acc)

  # attention scores of this (row block, column block) tile (MXU, bf16 operands)
  s = jnp.dot(q_ref[...], kT_ref[...],
              preferred_element_type=jnp.float32) * inv_temp        # (BM, BN)

  # exp(s) computed ONCE and reused for prob and for the adjacency entries.
  # TODO(synk): exp(s) is unguarded (matches the PyTorch reference); extreme
  # attention scores overflow to inf and poison that row's normalization.
  e = jnp.exp(s)

  # mask_a_prob = clamp(sigmoid(s), 0.001, 0.999); 1 - 1/(1+e) is robust as e->inf.
  prob = jnp.clip(1.0 - 1.0 / (1.0 + e), 0.001, 0.999)
  prob_ref[...] = prob

  # RelaxedBernoulli(temperature=0.05) rsample.  logits = log(p)-log1p(-p) equals
  # clip(s, +-logit(0.999)) exactly because p = clamp(sigmoid(s), .001, .999).
  logits = jnp.clip(s, -logit_hi, logit_hi)
  z = (logits + noise_ref[...]) * (1.0 / bern_temp)
  mask = 1.0 / (1.0 + jnp.exp(-z))
  mask_ref[...] = mask

  # Adjacency row (identity folded analytically): accumulate the landmark-column
  # contributions of this column block.  lmcol zeroes non-landmark / padded cols.
  @pl.when(j < num_lm_blocks)
  def _accumulate():
    em = e * mask * lmcol_ref[...]
    deg_acc[...] += jnp.sum(em, axis=1, keepdims=True)
    agg_acc[...] += jnp.dot(em, allf_col_ref[...],
                            preferred_element_type=jnp.float32)

  # Finalize: degree-normalize, w_1 Linear, pred MLP on cat(own_X, tg_feature_1).
  # (own_X == first dim_in columns of all_feature_0 row; wm1a rows beyond dim_in
  #  are zero, so allf_row @ wm1a == own_X @ pred_w1[:dim_in].)
  @pl.when(j == pl.num_programs(1) - 1)
  def _finalize():
    agg = (agg_acc[...] + allf_row_ref[...]) / (deg_acc[...] + 1.0)
    tg_f1 = jnp.dot(agg, w1_ref[...],
                    preferred_element_type=jnp.float32) + b1_ref[...]
    h = (jnp.dot(allf_row_ref[...], wm1a_ref[...],
                 preferred_element_type=jnp.float32)
         + jnp.dot(tg_f1, wm1b_ref[...], preferred_element_type=jnp.float32)
         + bm1_ref[...])
    h = jnp.maximum(h, 0.0)
    y_ref[...] = jnp.dot(h, wm2_ref[...],
                         preferred_element_type=jnp.float32) + bm2_ref[...]


def init_params(key, dim_in, dim_z, dim_med, dim_out):
  """Deterministic synthetic parameters (shapes follow Geo.__init__)."""
  ks = jax.random.split(key, 6)
  f32 = jnp.float32
  p = {}
  # SimpleAttention1 Q / K projections: Linear(dim_in -> dim_z)
  p["wq"] = 0.2 * jax.random.normal(ks[0], (dim_in, dim_z), f32)
  p["bq"] = jnp.zeros((1, dim_z), f32)
  p["wk"] = 0.2 * jax.random.normal(ks[1], (dim_in, dim_z), f32)
  p["bk"] = jnp.zeros((1, dim_z), f32)
  # self.w_1: Linear(dim_in+2 -> dim_in+2)
  p["w1"] = 0.2 * jax.random.normal(ks[2], (dim_in + 2, dim_in + 2), f32)
  p["b1"] = 0.01 * jnp.ones((1, dim_in + 2), f32)
  # pred: Linear(dim_z -> dim_med), ReLU, Linear(dim_med -> dim_out)
  wm1 = 0.2 * jax.random.normal(ks[3], (dim_z, dim_med), f32)
  p["wm1a"] = wm1[:dim_in, :]          # rows acting on tg_X in the concat
  p["wm1b"] = wm1[dim_in:, :]          # rows acting on tg_feature_1
  p["bm1"] = 0.01 * jnp.ones((1, dim_med), f32)
  p["wm2"] = 0.2 * jax.random.normal(ks[4], (dim_med, dim_out), f32)
  p["bm2"] = jnp.zeros((1, dim_out), f32)
  return p


def geo_forward(params, lm_X, lm_Y, tg_X, tg_Y, reserve_ratio,
                perm_key, noise_key):
  f32, bf16 = jnp.float32, jnp.bfloat16
  dim_in = lm_X.shape[1]
  dim_z = params["wq"].shape[1]
  dim_med = params["wm2"].shape[0]
  dim_out = params["wm2"].shape[1]
  dim_f = dim_in + 2

  # --- torch.randperm landmark subsampling (glue) ---------------------------
  n_x = lm_X.shape[0]
  num_to_reserve = max(1, int(n_x * reserve_ratio))
  perm = jax.random.permutation(perm_key, n_x)
  reserved = perm[:num_to_reserve]
  lm_X = lm_X[reserved, :]
  lm_Y = lm_Y[reserved, :]

  n1 = num_to_reserve
  n2 = tg_Y.shape[0]
  n = n1 + n2

  # --- block geometry --------------------------------------------------------
  bm = 256 if n >= 1024 else 128          # keep >=2 parallel steps earlier (v7x)
  bn = 512 if n > 256 else _rup(n, 128)   # column tile for prob/mask/score
  n_pad = _rup(n, max(bm, bn))
  bn = min(bn, n_pad)
  dz_s = _rup(dim_z, 16)                  # dz only needs sublane granularity
  df_p = _rup(dim_f, 128)
  dmed_p = _rup(dim_med, 128)
  dout_p = _rup(dim_out, 128)
  num_lm_blocks = -(-n1 // bn)            # column blocks overlapping [0, n1)

  def pad2(x, rows, cols):
    return jnp.pad(x, ((0, rows - x.shape[0]), (0, cols - x.shape[1])))

  # --- feature concats (glue) -------------------------------------------------
  combined = jnp.concatenate([lm_X, tg_X], axis=0)                       # (n, din)
  lm_feature = jnp.concatenate([lm_X, lm_Y], axis=1)                     # (n1, df)
  tg_feature_0 = jnp.concatenate([tg_X, jnp.zeros((n2, 2), f32)], axis=1)
  all_f0 = jnp.concatenate([lm_feature, tg_feature_0], axis=0)           # (n, df)
  allf_p = pad2(all_f0, n_pad, df_p)

  # --- fused Q|K projection (one matmul), K pre-transposed, bf16 --------------
  wqk = jnp.concatenate([pad2(params["wq"], dim_in, dz_s),
                         pad2(params["wk"], dim_in, dz_s)], axis=1)
  bqk = jnp.concatenate([pad2(params["bq"], 1, dz_s),
                         pad2(params["bk"], 1, dz_s)], axis=1)
  qk = pad2(jnp.dot(combined, wqk, preferred_element_type=f32) + bqk,
            n_pad, 2 * dz_s)
  q_p = qk[:, :dz_s].astype(bf16)                     # (n_pad, dz_s)
  kT_p = jnp.transpose(qk[:, dz_s:]).astype(bf16)     # (dz_s, n_pad)

  # landmark-column selector (replaces per-step iota/where in the kernel)
  lm_colmask = (jnp.arange(n_pad) < n1).astype(f32).reshape(1, n_pad)

  # RelaxedBernoulli logistic noise, generated once in the wrapper.
  noise = jax.random.logistic(noise_key, (n_pad, n_pad), f32)

  w1_p = pad2(params["w1"], df_p, df_p)
  b1_p = pad2(params["b1"], 1, df_p)
  wm1a_p = pad2(params["wm1a"], df_p, dmed_p)   # zero rows beyond dim_in
  wm1b_p = pad2(params["wm1b"], df_p, dmed_p)
  bm1_p = pad2(params["bm1"], 1, dmed_p)
  wm2_p = pad2(params["wm2"], dmed_p, dout_p)
  bm2_p = pad2(params["bm2"], 1, dout_p)

  kernel = functools.partial(
      _geo_kernel,
      inv_temp=float(1.0 / math.sqrt(dim_z)), bern_temp=0.05,
      logit_hi=float(math.log(0.999) - math.log(0.001)),
      num_lm_blocks=num_lm_blocks)

  grid = (n_pad // bm, n_pad // bn)
  resident = lambda r, c: pl.BlockSpec((r, c), lambda i, j: (0, 0))

  grid_spec = pltpu.PrefetchScalarGridSpec(
      num_scalar_prefetch=0,
      grid=grid,
      in_specs=[
          pl.BlockSpec((bm, dz_s), lambda i, j: (i, 0)),          # Q rows
          pl.BlockSpec((dz_s, bn), lambda i, j: (0, j)),          # K^T cols
          pl.BlockSpec((bm, bn), lambda i, j: (i, j)),            # noise tile
          pl.BlockSpec((1, bn), lambda i, j: (0, j)),             # lm col mask
          # all_feature_0 column rows; clamp so non-landmark steps reuse the DMA
          pl.BlockSpec((bn, df_p),
                       lambda i, j: (jnp.minimum(j, num_lm_blocks - 1), 0)),
          pl.BlockSpec((bm, df_p), lambda i, j: (i, 0)),          # all_f0 own rows
          resident(df_p, df_p), resident(1, df_p),                # w1, b1
          resident(df_p, dmed_p), resident(df_p, dmed_p),         # wm1a, wm1b
          resident(1, dmed_p),                                    # bm1
          resident(dmed_p, dout_p), resident(1, dout_p),          # wm2, bm2
      ],
      out_specs=[
          pl.BlockSpec((bm, bn), lambda i, j: (i, j)),            # prob tile
          pl.BlockSpec((bm, bn), lambda i, j: (i, j)),            # mask tile
          pl.BlockSpec((bm, dout_p), lambda i, j: (i, 0)),        # y rows
      ],
      scratch_shapes=[
          pltpu.VMEM((bm, df_p), jnp.float32),                    # agg accumulator
          pltpu.VMEM((bm, 1), jnp.float32),                       # degree accumulator
      ],
  )

  # VMEM limit from the actual buffer sizes (x4 headroom for kernel temporaries),
  # clamped to [32 MiB, 56 MiB]: above v5e's 16 MiB default, below v7x's 64 MiB.
  bytes_step = (2 * (bm * dz_s * 2) + 2 * (dz_s * bn * 2) + 2 * (bm * bn * 4)
                + 2 * (bn * 4) + 2 * (bn * df_p * 4) + 2 * (bm * df_p * 4)
                + 2 * (2 * bm * bn * 4) + 2 * (bm * dout_p * 4))
  bytes_res = 2 * 4 * (df_p * df_p + df_p + 2 * df_p * dmed_p + dmed_p
                       + dmed_p * dout_p + dout_p)
  bytes_scr = 4 * (bm * df_p + bm)
  vmem_limit = int(min(56 * 2 ** 20,
                       max(32 * 2 ** 20, 4 * (bytes_step + bytes_res + bytes_scr))))

  flops = (2 * n_pad * n_pad * dz_s
           + 2 * n_pad * num_lm_blocks * bn * df_p
           + 2 * n_pad * (df_p * df_p + 2 * df_p * dmed_p + dmed_p * dout_p))
  cost = pl.CostEstimate(
      flops=int(flops),
      transcendentals=int(2 * n_pad * n_pad),
      bytes_accessed=int(4 * (3 * n_pad * n_pad
                              + n_pad * (df_p + dout_p) + n_pad * dz_s)))

  prob_pad, mask_pad, y_pad = pl.pallas_call(
      kernel,
      grid_spec=grid_spec,
      out_shape=(
          jax.ShapeDtypeStruct((n_pad, n_pad), f32),
          jax.ShapeDtypeStruct((n_pad, n_pad), f32),
          jax.ShapeDtypeStruct((n_pad, dout_p), f32),
      ),
      compiler_params=pltpu.CompilerParams(
          dimension_semantics=("parallel", "arbitrary"),
          vmem_limit_bytes=vmem_limit),
      cost_estimate=cost,
  )(q_p, kT_p, noise, lm_colmask, allf_p, allf_p,
    w1_p, b1_p, wm1a_p, wm1b_p, bm1_p, wm2_p, bm2_p)

  # Only slice (extra N^2 HBM copy) when padding was actually added.
  if n == n_pad:
    mask_a_prob, mask_a_matrix = prob_pad, mask_pad
  else:
    mask_a_prob = prob_pad[:n, :n]
    mask_a_matrix = mask_pad[:n, :n]
  y_pred = y_pad[n1:n1 + n2, :dim_out]
  return y_pred, mask_a_prob, mask_a_matrix


if __name__ == "__main__":
  key = jax.random.PRNGKey(0)
  dim_in, dim_med, dim_out = 4, 32, 2
  dim_z = 2 * dim_in + 2   # required: pred MLP input dim == 2*dim_in + 2

  kx, ky, ktx, kty, kparam, kperm, knoise = jax.random.split(key, 7)
  lm_X = jax.random.normal(kx, (16, dim_in), jnp.float32)
  lm_Y = jax.random.normal(ky, (16, 2), jnp.float32)
  tg_X = jax.random.normal(ktx, (8, dim_in), jnp.float32)
  tg_Y = jax.random.normal(kty, (8, 2), jnp.float32)

  params = init_params(kparam, dim_in, dim_z, dim_med, dim_out)

  y_pred, mask_a_prob, mask_a_matrix = geo_forward(
      params, lm_X, lm_Y, tg_X, tg_Y, reserve_ratio=0.5,
      perm_key=kperm, noise_key=knoise)
  jax.block_until_ready((y_pred, mask_a_prob, mask_a_matrix))

  assert y_pred.shape == (8, dim_out)
  assert mask_a_prob.shape == (16, 16)
  assert mask_a_matrix.shape == (16, 16)
  assert bool(jnp.all(jnp.isfinite(y_pred)))
  assert bool(jnp.all((mask_a_prob >= 0.001) & (mask_a_prob <= 0.999)))
  print("KERNEL_OK")
</pallas_src>

<mosaic_0001>
module attributes {stable_mosaic.version = 11 : i64} {
  func.func @_geo_kernel(%arg0: i32, %arg1: i32, %arg2: memref<128x16xbf16, #tpu.memory_space<vmem>>, %arg3: memref<16x128xbf16, #tpu.memory_space<vmem>>, %arg4: memref<128x128xf32, #tpu.memory_space<vmem>>, %arg5: memref<1x128xf32, #tpu.memory_space<vmem>>, %arg6: memref<128x128xf32, #tpu.memory_space<vmem>>, %arg7: memref<128x128xf32, #tpu.memory_space<vmem>>, %arg8: memref<128x128xf32, #tpu.memory_space<vmem>>, %arg9: memref<1x128xf32, #tpu.memory_space<vmem>>, %arg10: memref<128x128xf32, #tpu.memory_space<vmem>>, %arg11: memref<128x128xf32, #tpu.memory_space<vmem>>, %arg12: memref<1x128xf32, #tpu.memory_space<vmem>>, %arg13: memref<128x128xf32, #tpu.memory_space<vmem>>, %arg14: memref<1x128xf32, #tpu.memory_space<vmem>>, %arg15: memref<128x128xf32, #tpu.memory_space<vmem>>, %arg16: memref<128x128xf32, #tpu.memory_space<vmem>>, %arg17: memref<128x128xf32, #tpu.memory_space<vmem>>, %arg18: memref<128x128xf32, #tpu.memory_space<vmem>>, %arg19: memref<128x1xf32, #tpu.memory_space<vmem>>) attributes {dimension_semantics = [#tpu.dimension_semantics<parallel>, #tpu.dimension_semantics<arbitrary>], iteration_bounds = array<i64: 1, 1>, scalar_prefetch = 0 : i64, scratch_operands = 2 : i64, tpu.core_type = #tpu.core_type<tc>, window_params = [{transform_indices = @transform_0, window_bounds = array<i64: 128, 16>}, {transform_indices = @transform_1, window_bounds = array<i64: 16, 128>}, {transform_indices = @transform_2, window_bounds = array<i64: 128, 128>}, {transform_indices = @transform_3, window_bounds = array<i64: 1, 128>}, {transform_indices = @transform_4, window_bounds = array<i64: 128, 128>}, {transform_indices = @transform_5, window_bounds = array<i64: 128, 128>}, {pipeline_mode = #tpu.pipeline_mode<synchronous>, transform_indices = @transform_6, window_bounds = array<i64: 128, 128>}, {pipeline_mode = #tpu.pipeline_mode<synchronous>, transform_indices = @transform_7, window_bounds = array<i64: 1, 128>}, {pipeline_mode = #tpu.pipeline_mode<synchronous>, transform_indices = @transform_8, window_bounds = array<i64: 128, 128>}, {pipeline_mode = #tpu.pipeline_mode<synchronous>, transform_indices = @transform_9, window_bounds = array<i64: 128, 128>}, {pipeline_mode = #tpu.pipeline_mode<synchronous>, transform_indices = @transform_10, window_bounds = array<i64: 1, 128>}, {pipeline_mode = #tpu.pipeline_mode<synchronous>, transform_indices = @transform_11, window_bounds = array<i64: 128, 128>}, {pipeline_mode = #tpu.pipeline_mode<synchronous>, transform_indices = @transform_12, window_bounds = array<i64: 1, 128>}, {transform_indices = @transform_13, window_bounds = array<i64: 128, 128>}, {transform_indices = @transform_14, window_bounds = array<i64: 128, 128>}, {transform_indices = @transform_15, window_bounds = array<i64: 128, 128>}]} {
    %c0_i32 = arith.constant 0 : i32
    %0 = arith.cmpi eq, %arg1, %c0_i32 : i32
    %1 = arith.extui %0 : i1 to i32
    %c0_i32_0 = arith.constant 0 : i32
    %2 = arith.cmpi ne, %1, %c0_i32_0 : i32
    scf.if %2 {
      %cst_25 = arith.constant 0.000000e+00 : f32
      %42 = vector.broadcast %cst_25 : f32 to vector<128x128xf32>
      %c0_26 = arith.constant 0 : index
      %c0_27 = arith.constant 0 : index
      %43 = vector.load %arg18[%c0_26, %c0_27] : memref<128x128xf32, #tpu.memory_space<vmem>>, vector<128x128xf32>
      tpu.vector_store %arg18[%c0_26, %c0_27], %42 {strides = array<i32>} : memref<128x128xf32, #tpu.memory_space<vmem>>, vector<128x128xf32>,
      %cst_28 = arith.constant 0.000000e+00 : f32
      %44 = vector.broadcast %cst_28 : f32 to vector<128x1xf32>
      %c0_29 = arith.constant 0 : index
      %c0_30 = arith.constant 0 : index
      %45 = vector.load %arg19[%c0_29, %c0_30] : memref<128x1xf32, #tpu.memory_space<vmem>>, vector<128x1xf32>
      tpu.vector_store %arg19[%c0_29, %c0_30], %44 {strides = array<i32>} : memref<128x1xf32, #tpu.memory_space<vmem>>, vector<128x1xf32>,
    } else {
    }
    %c0 = arith.constant 0 : index
    %c0_1 = arith.constant 0 : index
    %3 = vector.load %arg2[%c0, %c0_1] : memref<128x16xbf16, #tpu.memory_space<vmem>>, vector<128x16xbf16>
    %c0_2 = arith.constant 0 : index
    %c0_3 = arith.constant 0 : index
    %4 = vector.load %arg3[%c0_2, %c0_3] : memref<16x128xbf16, #tpu.memory_space<vmem>>, vector<16x128xbf16>
    %cst = arith.constant dense<0.000000e+00> : vector<128x128xf32>
    %5 = tpu.matmul %3, %4, %cst {dimension_numbers = #tpu.dot_dimension_numbers<[1], [0], [0], [1], [0, 0, 1, 1], [], []>} : vector<128x16xbf16>, vector<16x128xbf16>, vector<128x128xf32> -> vector<128x128xf32>
    %cst_4 = arith.constant 0.316227764 : f32
    %6 = vector.broadcast %cst_4 : f32 to vector<128x128xf32>
    %7 = arith.mulf %5, %6 : vector<128x128xf32>
    %8 = math.exp %7 : vector<128x128xf32>
    %cst_5 = arith.constant 1.000000e+00 : f32
    %9 = vector.broadcast %cst_5 : f32 to vector<128x128xf32>
    %10 = arith.addf %9, %8 : vector<128x128xf32>
    %cst_6 = arith.constant 1.000000e+00 : f32
    %11 = vector.broadcast %cst_6 : f32 to vector<128x128xf32>
    %12 = arith.divf %11, %10 : vector<128x128xf32>
    %cst_7 = arith.constant 1.000000e+00 : f32
    %13 = vector.broadcast %cst_7 : f32 to vector<128x128xf32>
    %14 = arith.subf %13, %12 : vector<128x128xf32>
    %cst_8 = arith.constant 1.000000e-03 : f32
    %cst_9 = arith.constant 9.990000e-01 : f32
    %15 = vector.broadcast %cst_8 : f32 to vector<128x128xf32>
    %16 = arith.maximumf %15, %14 : vector<128x128xf32>
    %17 = vector.broadcast %cst_9 : f32 to vector<128x128xf32>
    %18 = arith.minimumf %17, %16 : vector<128x128xf32>
    %c0_10 = arith.constant 0 : index
    %c0_11 = arith.constant 0 : index
    %19 = vector.load %arg15[%c0_10, %c0_11] : memref<128x128xf32, #tpu.memory_space<vmem>>, vector<128x128xf32>
    tpu.vector_store %arg15[%c0_10, %c0_11], %18 {strides = array<i32>} : memref<128x128xf32, #tpu.memory_space<vmem>>, vector<128x128xf32>,
    %cst_12 = arith.constant -6.90675497 : f32
    %cst_13 = arith.constant 6.90675497 : f32
    %20 = vector.broadcast %cst_12 : f32 to vector<128x128xf32>
    %21 = arith.maximumf %20, %7 : vector<128x128xf32>
    %22 = vector.broadcast %cst_13 : f32 to vector<128x128xf32>
    %23 = arith.minimumf %22, %21 : vector<128x128xf32>
    %c0_14 = arith.constant 0 : index
    %c0_15 = arith.constant 0 : index
    %24 = vector.load %arg4[%c0_14, %c0_15] : memref<128x128xf32, #tpu.memory_space<vmem>>, vector<128x128xf32>
    %25 = arith.addf %23, %24 : vector<128x128xf32>
    %cst_16 = arith.constant 2.000000e+01 : f32
    %26 = vector.broadcast %cst_16 : f32 to vector<128x128xf32>
    %27 = arith.mulf %25, %26 : vector<128x128xf32>
    %cst_17 = arith.constant 0.000000e+00 : f32
    %28 = vector.broadcast %cst_17 : f32 to vector<128x128xf32>
    %29 = arith.subf %28, %27 : vector<128x128xf32>
    %30 = math.exp %29 : vector<128x128xf32>
    %cst_18 = arith.constant 1.000000e+00 : f32
    %31 = vector.broadcast %cst_18 : f32 to vector<128x128xf32>
    %32 = arith.addf %31, %30 : vector<128x128xf32>
    %cst_19 = arith.constant 1.000000e+00 : f32
    %33 = vector.broadcast %cst_19 : f32 to vector<128x128xf32>
    %34 = arith.divf %33, %32 : vector<128x128xf32>
    %c0_20 = arith.constant 0 : index
    %c0_21 = arith.constant 0 : index
    %35 = vector.load %arg16[%c0_20, %c0_21] : memref<128x128xf32, #tpu.memory_space<vmem>>, vector<128x128xf32>
    tpu.vector_store %arg16[%c0_20, %c0_21], %34 {strides = array<i32>} : memref<128x128xf32, #tpu.memory_space<vmem>>, vector<128x128xf32>,
    %c1_i32 = arith.constant 1 : i32
    %36 = arith.cmpi slt, %arg1, %c1_i32 : i32
    %37 = arith.extui %36 : i1 to i32
    %c0_i32_22 = arith.constant 0 : i32
    %38 = arith.cmpi ne, %37, %c0_i32_22 : i32
    scf.if %38 {
      %42 = arith.mulf %8, %34 : vector<128x128xf32>
      %c0_25 = arith.constant 0 : index
      %c0_26 = arith.constant 0 : index
      %43 = vector.load %arg5[%c0_25, %c0_26] : memref<1x128xf32, #tpu.memory_space<vmem>>, vector<1x128xf32>
      %44 = vector.broadcast %43 : vector<1x128xf32> to vector<128x128xf32>
      %45 = arith.mulf %42, %44 : vector<128x128xf32>
      %c0_27 = arith.constant 0 : index
      %c0_28 = arith.constant 0 : index
      %46 = vector.load %arg19[%c0_27, %c0_28] : memref<128x1xf32, #tpu.memory_space<vmem>>, vector<128x1xf32>
      %cst_29 = arith.constant dense<0.000000e+00> : vector<128xf32>
      %47 = vector.multi_reduction <add>, %45, %cst_29 [1] : vector<128x128xf32> to vector<128xf32>
      %48 = vector.shape_cast %47 : vector<128xf32> to vector<128x1xf32>
      %49 = arith.addf %46, %48 : vector<128x1xf32>
      %c0_30 = arith.constant 0 : index
      %c0_31 = arith.constant 0 : index
      %50 = vector.load %arg19[%c0_30, %c0_31] : memref<128x1xf32, #tpu.memory_space<vmem>>, vector<128x1xf32>
      tpu.vector_store %arg19[%c0_30, %c0_31], %49 {strides = array<i32>} : memref<128x1xf32, #tpu.memory_space<vmem>>, vector<128x1xf32>,
      %c0_32 = arith.constant 0 : index
      %c0_33 = arith.constant 0 : index
      %51 = vector.load %arg18[%c0_32, %c0_33] : memref<128x128xf32, #tpu.memory_space<vmem>>, vector<128x128xf32>
      %c0_34 = arith.constant 0 : index
      %c0_35 = arith.constant 0 : index
      %52 = vector.load %arg6[%c0_34, %c0_35] : memref<128x128xf32, #tpu.memory_space<vmem>>, vector<128x128xf32>
      %cst_36 = arith.constant dense<0.000000e+00> : vector<128x128xf32>
      %53 = tpu.matmul %45, %52, %cst_36 {dimension_numbers = #tpu.dot_dimension_numbers<[1], [0], [0], [1], [0, 0, 1, 1], [], []>} : vector<128x128xf32>, vector<128x128xf32>, vector<128x128xf32> -> vector<128x128xf32>
      %54 = arith.addf %51, %53 : vector<128x128xf32>
      %c0_37 = arith.constant 0 : index
      %c0_38 = arith.constant 0 : index
      %55 = vector.load %arg18[%c0_37, %c0_38] : memref<128x128xf32, #tpu.memory_space<vmem>>, vector<128x128xf32>
      tpu.vector_store %arg18[%c0_37, %c0_38], %54 {strides = array<i32>} : memref<128x128xf32, #tpu.memory_space<vmem>>, vector<128x128xf32>,
    } else {
    }
    %c0_i32_23 = arith.constant 0 : i32
    %39 = arith.cmpi eq, %arg1, %c0_i32_23 : i32
    %40 = arith.extui %39 : i1 to i32
    %c0_i32_24 = arith.constant 0 : i32
    %41 = arith.cmpi ne, %40, %c0_i32_24 : i32
    scf.if %41 {
      %c0_25 = arith.constant 0 : index
      %c0_26 = arith.constant 0 : index
      %42 = vector.load %arg18[%c0_25, %c0_26] : memref<128x128xf32, #tpu.memory_space<vmem>>, vector<128x128xf32>
      %c0_27 = arith.constant 0 : index
      %c0_28 = arith.constant 0 : index
      %43 = vector.load %arg7[%c0_27, %c0_28] : memref<128x128xf32, #tpu.memory_space<vmem>>, vector<128x128xf32>
      %44 = arith.addf %42, %43 : vector<128x128xf32>
      %c0_29 = arith.constant 0 : index
      %c0_30 = arith.constant 0 : index
      %45 = vector.load %arg19[%c0_29, %c0_30] : memref<128x1xf32, #tpu.memory_space<vmem>>, vector<128x1xf32>
      %cst_31 = arith.constant 1.000000e+00 : f32
      %46 = vector.broadcast %cst_31 : f32 to vector<128x1xf32>
      %47 = arith.addf %45, %46 : vector<128x1xf32>
      %48 = vector.broadcast %47 : vector<128x1xf32> to vector<128x128xf32>
      %49 = arith.divf %44, %48 : vector<128x128xf32>
      %c0_32 = arith.constant 0 : index
      %c0_33 = arith.constant 0 : index
      %50 = vector.load %arg8[%c0_32, %c0_33] : memref<128x128xf32, #tpu.memory_space<vmem>>, vector<128x128xf32>
      %cst_34 = arith.constant dense<0.000000e+00> : vector<128x128xf32>
      %51 = tpu.matmul %49, %50, %cst_34 {dimension_numbers = #tpu.dot_dimension_numbers<[1], [0], [0], [1], [0, 0, 1, 1], [], []>} : vector<128x128xf32>, vector<128x128xf32>, vector<128x128xf32> -> vector<128x128xf32>
      %c0_35 = arith.constant 0 : index
      %c0_36 = arith.constant 0 : index
      %52 = vector.load %arg9[%c0_35, %c0_36] : memref<1x128xf32, #tpu.memory_space<vmem>>, vector<1x128xf32>
      %53 = vector.broadcast %52 : vector<1x128xf32> to vector<128x128xf32>
      %54 = arith.addf %51, %53 : vector<128x128xf32>
      %c0_37 = arith.constant 0 : index
      %c0_38 = arith.constant 0 : index
      %55 = vector.load %arg7[%c0_37, %c0_38] : memref<128x128xf32, #tpu.memory_space<vmem>>, vector<128x128xf32>
      %c0_39 = arith.constant 0 : index
      %c0_40 = arith.constant 0 : index
      %56 = vector.load %arg10[%c0_39, %c0_40] : memref<128x128xf32, #tpu.memory_space<vmem>>, vector<128x128xf32>
      %cst_41 = arith.constant dense<0.000000e+00> : vector<128x128xf32>
      %57 = tpu.matmul %55, %56, %cst_41 {dimension_numbers = #tpu.dot_dimension_numbers<[1], [0], [0], [1], [0, 0, 1, 1], [], []>} : vector<128x128xf32>, vector<128x128xf32>, vector<128x128xf32> -> vector<128x128xf32>
      %c0_42 = arith.constant 0 : index
      %c0_43 = arith.constant 0 : index
      %58 = vector.load %arg11[%c0_42, %c0_43] : memref<128x128xf32, #tpu.memory_space<vmem>>, vector<128x128xf32>
      %cst_44 = arith.constant dense<0.000000e+00> : vector<128x128xf32>
      %59 = tpu.matmul %54, %58, %cst_44 {dimension_numbers = #tpu.dot_dimension_numbers<[1], [0], [0], [1], [0, 0, 1, 1], [], []>} : vector<128x128xf32>, vector<128x128xf32>, vector<128x128xf32> -> vector<128x128xf32>
      %60 = arith.addf %57, %59 : vector<128x128xf32>
      %c0_45 = arith.constant 0 : index
      %c0_46 = arith.constant 0 : index
      %61 = vector.load %arg12[%c0_45, %c0_46] : memref<1x128xf32, #tpu.memory_space<vmem>>, vector<1x128xf32>
      %62 = vector.broadcast %61 : vector<1x128xf32> to vector<128x128xf32>
      %63 = arith.addf %60, %62 : vector<128x128xf32>
      %cst_47 = arith.constant 0.000000e+00 : f32
      %64 = vector.broadcast %cst_47 : f32 to vector<128x128xf32>
      %65 = arith.maximumf %63, %64 : vector<128x128xf32>
      %c0_48 = arith.constant 0 : index
      %c0_49 = arith.constant 0 : index
      %66 = vector.load %arg13[%c0_48, %c0_49] : memref<128x128xf32, #tpu.memory_space<vmem>>, vector<128x128xf32>
      %cst_50 = arith.constant dense<0.000000e+00> : vector<128x128xf32>
      %67 = tpu.matmul %65, %66, %cst_50 {dimension_numbers = #tpu.dot_dimension_numbers<[1], [0], [0], [1], [0, 0, 1, 1], [], []>} : vector<128x128xf32>, vector<128x128xf32>, vector<128x128xf32> -> vector<128x128xf32>
      %c0_51 = arith.constant 0 : index
      %c0_52 = arith.constant 0 : index
      %68 = vector.load %arg14[%c0_51, %c0_52] : memref<1x128xf32, #tpu.memory_space<vmem>>, vector<1x128xf32>
      %69 = vector.broadcast %68 : vector<1x128xf32> to vector<128x128xf32>
      %70 = arith.addf %67, %69 : vector<128x128xf32>
      %c0_53 = arith.constant 0 : index
      %c0_54 = arith.constant 0 : index
      %71 = vector.load %arg17[%c0_53, %c0_54] : memref<128x128xf32, #tpu.memory_space<vmem>>, vector<128x128xf32>
      tpu.vector_store %arg17[%c0_53, %c0_54], %70 {strides = array<i32>} : memref<128x128xf32, #tpu.memory_space<vmem>>, vector<128x128xf32>,
    } else {
    }
    return
  }
  func.func @transform_0(%arg0: i32, %arg1: i32) -> (i32, i32) {
    %c0_i32 = arith.constant 0 : i32
    %c0_i32_0 = arith.constant 0 : i32
    return %arg0, %c0_i32 : i32, i32
  }
  func.func @transform_1(%arg0: i32, %arg1: i32) -> (i32, i32) {
    %c0_i32 = arith.constant 0 : i32
    %c0_i32_0 = arith.constant 0 : i32
    return %c0_i32, %arg1 : i32, i32
  }
  func.func @transform_2(%arg0: i32, %arg1: i32) -> (i32, i32) {
    %c0_i32 = arith.constant 0 : i32
    return %arg0, %arg1 : i32, i32
  }
  func.func @transform_3(%arg0: i32, %arg1: i32) -> (i32, i32) {
    %c0_i32 = arith.constant 0 : i32
    %c0_i32_0 = arith.constant 0 : i32
    return %c0_i32, %arg1 : i32, i32
  }
  func.func @transform_4(%arg0: i32, %arg1: i32) -> (i32, i32) {
    %c0_i32 = arith.constant 0 : i32
    %0 = arith.minsi %arg1, %c0_i32 : i32
    %c0_i32_0 = arith.constant 0 : i32
    %c0_i32_1 = arith.constant 0 : i32
    return %0, %c0_i32_0 : i32, i32
  }
  func.func @transform_5(%arg0: i32, %arg1: i32) -> (i32, i32) {
    %c0_i32 = arith.constant 0 : i32
    %c0_i32_0 = arith.constant 0 : i32
    return %arg0, %c0_i32 : i32, i32
  }
  func.func @transform_6(%arg0: i32, %arg1: i32) -> (i32, i32) {
    %c0_i32 = arith.constant 0 : i32
    %c0_i32_0 = arith.constant 0 : i32
    %c0_i32_1 = arith.constant 0 : i32
    return %c0_i32, %c0_i32_0 : i32, i32
  }
  func.func @transform_7(%arg0: i32, %arg1: i32) -> (i32, i32) {
    %c0_i32 = arith.constant 0 : i32
    %c0_i32_0 = arith.constant 0 : i32
    %c0_i32_1 = arith.constant 0 : i32
    return %c0_i32, %c0_i32_0 : i32, i32
  }
  func.func @transform_8(%arg0: i32, %arg1: i32) -> (i32, i32) {
    %c0_i32 = arith.constant 0 : i32
    %c0_i32_0 = arith.constant 0 : i32
    %c0_i32_1 = arith.constant 0 : i32
    return %c0_i32, %c0_i32_0 : i32, i32
  }
  func.func @transform_9(%arg0: i32, %arg1: i32) -> (i32, i32) {
    %c0_i32 = arith.constant 0 : i32
    %c0_i32_0 = arith.constant 0 : i32
    %c0_i32_1 = arith.constant 0 : i32
    return %c0_i32, %c0_i32_0 : i32, i32
  }
  func.func @transform_10(%arg0: i32, %arg1: i32) -> (i32, i32) {
    %c0_i32 = arith.constant 0 : i32
    %c0_i32_0 = arith.constant 0 : i32
    %c0_i32_1 = arith.constant 0 : i32
    return %c0_i32, %c0_i32_0 : i32, i32
  }
  func.func @transform_11(%arg0: i32, %arg1: i32) -> (i32, i32) {
    %c0_i32 = arith.constant 0 : i32
    %c0_i32_0 = arith.constant 0 : i32
    %c0_i32_1 = arith.constant 0 : i32
    return %c0_i32, %c0_i32_0 : i32, i32
  }
  func.func @transform_12(%arg0: i32, %arg1: i32) -> (i32, i32) {
    %c0_i32 = arith.constant 0 : i32
    %c0_i32_0 = arith.constant 0 : i32
    %c0_i32_1 = arith.constant 0 : i32
    return %c0_i32, %c0_i32_0 : i32, i32
  }
  func.func @transform_13(%arg0: i32, %arg1: i32) -> (i32, i32) {
    %c0_i32 = arith.constant 0 : i32
    return %arg0, %arg1 : i32, i32
  }
  func.func @transform_14(%arg0: i32, %arg1: i32) -> (i32, i32) {
    %c0_i32 = arith.constant 0 : i32
    return %arg0, %arg1 : i32, i32
  }
  func.func @transform_15(%arg0: i32, %arg1: i32) -> (i32, i32) {
    %c0_i32 = arith.constant 0 : i32
    %c0_i32_0 = arith.constant 0 : i32
    return %arg0, %c0_i32 : i32, i32
  }
}

</mosaic_0001>

<llo_original>
// kernel: tpu_custom_call.1
$region0: #{tpu_custom_call.1}
  #allocation0 [shape = 'u32[]', space=smem, size = 0x4, offset = 0x4, fixed_abs, tag = 'smem constant byte address 0x4 - core index']
  #allocation1 [shape = 'u32[144,128]{1,0:T(1,128)}', space=vmem, size = 0x12000, scoped, tag = 'internal scratch']
  #allocation2 [shape = 'f32[128,128]{1,0:T(8,128)}', space=vmem, size = 0x10000, scoped, tag = 'scratch operand']
  #allocation3 [shape = 'f32[128,1]{1,0:T(8,128)}', space=vmem, size = 0x10000, scoped, tag = 'scratch operand']
  %s0 = inlined_call_operand.vmem [shape: bf16[128,16], index: 0, kind: input, shape index: {}]
  %s1 = inlined_call_operand.vmem [shape: bf16[16,128], index: 1, kind: input, shape index: {}]
  %s2 = inlined_call_operand.hbm [shape: f32[128,128], index: 2, kind: input, shape index: {}]
  %s3 = inlined_call_operand.vmem [shape: f32[1,128], index: 3, kind: input, shape index: {}]
  %s4 = inlined_call_operand.hbm [shape: f32[128,128], index: 4, kind: input, shape index: {}]
  %s5 = inlined_call_operand.hbm [shape: f32[128,128], index: 5, kind: input, shape index: {}]
  %s6 = inlined_call_operand.hbm [shape: f32[128,128], index: 6, kind: input, shape index: {}]
  %s7 = inlined_call_operand.vmem [shape: f32[1,128], index: 7, kind: input, shape index: {}]
  %s8 = inlined_call_operand.hbm [shape: f32[128,128], index: 8, kind: input, shape index: {}]
  %s9 = inlined_call_operand.hbm [shape: f32[128,128], index: 9, kind: input, shape index: {}]
  %s10 = inlined_call_operand.vmem [shape: f32[1,128], index: 10, kind: input, shape index: {}]
  %s11 = inlined_call_operand.hbm [shape: f32[128,128], index: 11, kind: input, shape index: {}]
  %s12 = inlined_call_operand.vmem [shape: f32[1,128], index: 12, kind: input, shape index: {}]
  %s13 = inlined_call_operand.hbm [shape: f32[128,128], index: 13, kind: output, shape index: {0}]
  %s14 = inlined_call_operand.hbm [shape: f32[128,128], index: 14, kind: output, shape index: {1}]
  %s15 = inlined_call_operand.hbm [shape: f32[128,128], index: 15, kind: output, shape index: {2}]
  %16 = xla_tuple %s13, %s14, %s15
  %s17 = sld [smem:[#allocation0]]
  $region118: #{tpu_custom_call.1} parent=0
    _
  %s19 = ssub.s32 1, %s17
  %s20 = scalar_select 0, %s19, %s17
  $region1: #{tpu_custom_call.1} parent=0
    #allocation4 [shape = 'u8[65536]{0}', space=vmem, size = 0x10000, scoped, tag = 'input window, operand 2, single buffered']
    #allocation5 [shape = 's32[1]{0}', space=sflag, size = 0x4, scoped, tag = 'scoped memory for tpu_custom_call.1']
    #allocation6 [shape = 's32[1]{0}', space=sflag, size = 0x4, scoped, tag = 'scoped memory for tpu_custom_call.1']
    #allocation7 [shape = 'u8[65536]{0}', space=vmem, size = 0x10000, scoped, tag = 'input window, operand 4, single buffered']
    #allocation8 [shape = 's32[1]{0}', space=sflag, size = 0x4, scoped, tag = 'scoped memory for tpu_custom_call.1']
    #allocation9 [shape = 'u8[65536]{0}', space=vmem, size = 0x10000, scoped, tag = 'input window, operand 5, single buffered']
    #allocation10 [shape = 'u8[65536]{0}', space=vmem, size = 0x10000, scoped, tag = 'input window, operand 6, single buffered']
    #allocation11 [shape = 's32[1]{0}', space=sflag, size = 0x4, scoped, tag = 'scoped memory for tpu_custom_call.1']
    #allocation12 [shape = 'u8[65536]{0}', space=vmem, size = 0x10000, scoped, tag = 'input window, operand 8, single buffered']
    #allocation13 [shape = 'u8[65536]{0}', space=vmem, size = 0x10000, scoped, tag = 'input window, operand 9, single buffered']
    #allocation14 [shape = 's32[1]{0}', space=sflag, size = 0x4, scoped, tag = 'scoped memory for tpu_custom_call.1']
    #allocation15 [shape = 'u8[65536]{0}', space=vmem, size = 0x10000, scoped, tag = 'input window, operand 11, single buffered']
    #allocation16 [shape = 'u8[65536]{0}', space=vmem, size = 0x10000, scoped, tag = 'output window, operand 0, single buffered']
    #allocation17 [shape = 'u8[65536]{0}', space=vmem, size = 0x10000, scoped, tag = 'output window, operand 1, single buffered']
    #allocation18 [shape = 's32[1]{0}', space=sflag, size = 0x4, scoped, tag = 'scoped memory for tpu_custom_call.1']
    #allocation19 [shape = 'u8[65536]{0}', space=vmem, size = 0x10000, scoped, tag = 'output window, operand 2, single buffered']
    %21 = vsyncpa [#allocation5], 0
    %22 = vsyncpa [#allocation8], 0
    %23 = vsyncpa [#allocation11], 0
    %24 = vsyncpa [#allocation14], 0
    %25 = vsyncpa [#allocation6], 0
    %26 = vsyncpa [#allocation18], 0
    // Predicated region
    $region2: #{tpu_custom_call.1} parent=1 // pred_check
      _
    $region3: #{tpu_custom_call.1} parent=1 // pred_check_branch
      %28 = sbr.rel (0) target = $region5
    $region4: #{tpu_custom_call.1} parent=1 // pred_region
      _
    $region5: #{tpu_custom_call.1} parent=1 // pred_fallthru
      _
    // Predicated region
    $region6: #{tpu_custom_call.1} parent=1 // pred_check
      _
    $region7: #{tpu_custom_call.1} parent=1 // pred_check_branch
      %30 = sbr.rel (0) target = $region9
    $region8: #{tpu_custom_call.1} parent=1 // pred_region
      _
    $region9: #{tpu_custom_call.1} parent=1 // pred_fallthru
      _
    // Predicated region
    $region10: #{tpu_custom_call.1} parent=1 // pred_check
      _
    $region11: #{tpu_custom_call.1} parent=1 // pred_check_branch
      %32 = sbr.rel (0) target = $region13
    $region12: #{tpu_custom_call.1} parent=1 // pred_region
      %s34 = ssub.s32 2048, 2048
      %35 = vsyncadd [#allocation5], %s34
      %s36 = sshll.u32 [#allocation4], 4
      %s37 = int_to_ptr.vmem [resolvable:$true] %s36
      %42 = dma.hbm_to_vmem [thread:$0]  %s2, 2048, %s37, [#allocation5], 128, 128, 8
    $region13: #{tpu_custom_call.1} parent=1 // pred_fallthru
      _
    // Predicated region
    $region14: #{tpu_custom_call.1} parent=1 // pred_check
      _
    $region15: #{tpu_custom_call.1} parent=1 // pred_check_branch
      %44 = sbr.rel (0) target = $region17
    $region16: #{tpu_custom_call.1} parent=1 // pred_region
      _
    $region17: #{tpu_custom_call.1} parent=1 // pred_fallthru
      _
    // Predicated region
    $region18: #{tpu_custom_call.1} parent=1 // pred_check
      _
    $region19: #{tpu_custom_call.1} parent=1 // pred_check_branch
      %46 = sbr.rel (0) target = $region21
    $region20: #{tpu_custom_call.1} parent=1 // pred_region
      %s48 = ssub.s32 2048, 2048
      %49 = vsyncadd [#allocation8], %s48
      %s50 = sshll.u32 [#allocation7], 4
      %s51 = int_to_ptr.vmem [resolvable:$true] %s50
      %56 = dma.hbm_to_vmem [thread:$0]  %s4, 2048, %s51, [#allocation8], 128, 128, 8
    $region21: #{tpu_custom_call.1} parent=1 // pred_fallthru
      _
    // Predicated region
    $region22: #{tpu_custom_call.1} parent=1 // pred_check
      _
    $region23: #{tpu_custom_call.1} parent=1 // pred_check_branch
      %58 = sbr.rel (0) target = $region25
    $region24: #{tpu_custom_call.1} parent=1 // pred_region
      %s60 = ssub.s32 2048, 2048
      %61 = vsyncadd [#allocation8], %s60
      %s62 = sshll.u32 [#allocation9], 4
      %s63 = int_to_ptr.vmem [resolvable:$true] %s62
      %68 = dma.hbm_to_vmem [thread:$0]  %s5, 2048, %s63, [#allocation8], 128, 128, 8
    $region25: #{tpu_custom_call.1} parent=1 // pred_fallthru
      _
    // Predicated region
    $region26: #{tpu_custom_call.1} parent=1 // pred_check
      _
    $region27: #{tpu_custom_call.1} parent=1 // pred_check_branch
      %70 = sbr.rel (0) target = $region29
    $region28: #{tpu_custom_call.1} parent=1 // pred_region
      %s72 = ssub.s32 2048, 2048
      %73 = vsyncadd [#allocation11], %s72
      %s74 = sshll.u32 [#allocation10], 4
      %s75 = int_to_ptr.vmem [resolvable:$true] %s74
      %80 = dma.hbm_to_vmem [thread:$0]  %s6, 2048, %s75, [#allocation11], 128, 128, 8
    $region29: #{tpu_custom_call.1} parent=1 // pred_fallthru
      _
    // Predicated region
    $region30: #{tpu_custom_call.1} parent=1 // pred_check
      _
    $region31: #{tpu_custom_call.1} parent=1 // pred_check_branch
      %82 = sbr.rel (0) target = $region33
    $region32: #{tpu_custom_call.1} parent=1 // pred_region
      _
    $region33: #{tpu_custom_call.1} parent=1 // pred_fallthru
      _
    // Predicated region
    $region34: #{tpu_custom_call.1} parent=1 // pred_check
      _
    $region35: #{tpu_custom_call.1} parent=1 // pred_check_branch
      %84 = sbr.rel (0) target = $region37
    $region36: #{tpu_custom_call.1} parent=1 // pred_region
      %s86 = ssub.s32 2048, 2048
      %87 = vsyncadd [#allocation11], %s86
      %s88 = sshll.u32 [#allocation12], 4
      %s89 = int_to_ptr.vmem [resolvable:$true] %s88
      %94 = dma.hbm_to_vmem [thread:$0]  %s8, 2048, %s89, [#allocation11], 128, 128, 8
    $region37: #{tpu_custom_call.1} parent=1 // pred_fallthru
      _
    // Predicated region
    $region38: #{tpu_custom_call.1} parent=1 // pred_check
      _
    $region39: #{tpu_custom_call.1} parent=1 // pred_check_branch
      %96 = sbr.rel (0) target = $region41
    $region40: #{tpu_custom_call.1} parent=1 // pred_region
      %s98 = ssub.s32 2048, 2048
      %99 = vsyncadd [#allocation14], %s98
      %s100 = sshll.u32 [#allocation13], 4
      %s101 = int_to_ptr.vmem [resolvable:$true] %s100
      %106 = dma.hbm_to_vmem [thread:$0]  %s9, 2048, %s101, [#allocation14], 128, 128, 8
    $region41: #{tpu_custom_call.1} parent=1 // pred_fallthru
      _
    // Predicated region
    $region42: #{tpu_custom_call.1} parent=1 // pred_check
      _
    $region43: #{tpu_custom_call.1} parent=1 // pred_check_branch
      %108 = sbr.rel (0) target = $region45
    $region44: #{tpu_custom_call.1} parent=1 // pred_region
      _
    $region45: #{tpu_custom_call.1} parent=1 // pred_fallthru
      _
    // Predicated region
    $region46: #{tpu_custom_call.1} parent=1 // pred_check
      _
    $region47: #{tpu_custom_call.1} parent=1 // pred_check_branch
      %110 = sbr.rel (0) target = $region49
    $region48: #{tpu_custom_call.1} parent=1 // pred_region
      %s112 = ssub.s32 2048, 2048
      %113 = vsyncadd [#allocation14], %s112
      %s114 = sshll.u32 [#allocation15], 4
      %s115 = int_to_ptr.vmem [resolvable:$true] %s114
      %120 = dma.hbm_to_vmem [thread:$0]  %s11, 2048, %s115, [#allocation14], 128, 128, 8
    $region49: #{tpu_custom_call.1} parent=1 // pred_fallthru
      _
    // Predicated region
    $region50: #{tpu_custom_call.1} parent=1 // pred_check
      _
    $region51: #{tpu_custom_call.1} parent=1 // pred_check_branch
      %122 = sbr.rel (0) target = $region53
    $region52: #{tpu_custom_call.1} parent=1 // pred_region
      _
    $region53: #{tpu_custom_call.1} parent=1 // pred_fallthru
      _
    // Predicated region
    $region54: #{tpu_custom_call.1} parent=1 // pred_check
      _
    $region55: #{tpu_custom_call.1} parent=1 // pred_check_branch
      %124 = sbr.rel (0) target = $region57
    $region56: #{tpu_custom_call.1} parent=1 // pred_region
      %125 = dma.done [#allocation5], 2048
    $region57: #{tpu_custom_call.1} parent=1 // pred_fallthru
      _
    // Predicated region
    $region58: #{tpu_custom_call.1} parent=1 // pred_check
      _
    $region59: #{tpu_custom_call.1} parent=1 // pred_check_branch
      %127 = sbr.rel (0) target = $region61
    $region60: #{tpu_custom_call.1} parent=1 // pred_region
      %128 = dma.done [#allocation8], 2048
    $region61: #{tpu_custom_call.1} parent=1 // pred_fallthru
      _
    // Predicated region
    $region62: #{tpu_custom_call.1} parent=1 // pred_check
      _
    $region63: #{tpu_custom_call.1} parent=1 // pred_check_branch
      %130 = sbr.rel (0) target = $region65
    $region64: #{tpu_custom_call.1} parent=1 // pred_region
      %131 = dma.done [#allocation8], 2048
    $region65: #{tpu_custom_call.1} parent=1 // pred_fallthru
      _
    // Predicated region
    $region66: #{tpu_custom_call.1} parent=1 // pred_check
      _
    $region67: #{tpu_custom_call.1} parent=1 // pred_check_branch
      %133 = sbr.rel (0) target = $region69
    $region68: #{tpu_custom_call.1} parent=1 // pred_region
      %134 = dma.done [#allocation11], 2048
    $region69: #{tpu_custom_call.1} parent=1 // pred_fallthru
      _
    // Predicated region
    $region70: #{tpu_custom_call.1} parent=1 // pred_check
      _
    $region71: #{tpu_custom_call.1} parent=1 // pred_check_branch
      %136 = sbr.rel (0) target = $region73
    $region72: #{tpu_custom_call.1} parent=1 // pred_region
      %137 = dma.done [#allocation11], 2048
    $region73: #{tpu_custom_call.1} parent=1 // pred_fallthru
      _
    // Predicated region
    $region74: #{tpu_custom_call.1} parent=1 // pred_check
      _
    $region75: #{tpu_custom_call.1} parent=1 // pred_check_branch
      %139 = sbr.rel (0) target = $region77
    $region76: #{tpu_custom_call.1} parent=1 // pred_region
      %140 = dma.done [#allocation14], 2048
    $region77: #{tpu_custom_call.1} parent=1 // pred_fallthru
      _
    // Predicated region
    $region78: #{tpu_custom_call.1} parent=1 // pred_check
      _
    $region79: #{tpu_custom_call.1} parent=1 // pred_check_branch
      %142 = sbr.rel (0) target = $region81
    $region80: #{tpu_custom_call.1} parent=1 // pred_region
      %143 = dma.done [#allocation14], 2048
    $region81: #{tpu_custom_call.1} parent=1 // pred_fallthru
      _
    %p145 = scmp.eq.s32.totalorder 0, 0
    // Predicated region
    $region82: #{tpu_custom_call.1} parent=1 // pred_check
      %p146 = pneg %p145
    $region83: #{tpu_custom_call.1} parent=1 // pred_check_branch
      %148 = sbr.rel (%p146) target = $region85
    $region84: #{tpu_custom_call.1} parent=1 // pred_region
      %149 = vst [vmem:[#allocation2] sm:$0xff] 0.0
      %150 = vst [vmem:[#allocation2 + $0x8] sm:$0xff] 0.0
      %151 = vst [vmem:[#allocation2 + $0x10] sm:$0xff] 0.0
      %152 = vst [vmem:[#allocation2 + $0x18] sm:$0xff] 0.0
      %153 = vst [vmem:[#allocation2 + $0x20] sm:$0xff] 0.0
      %154 = vst [vmem:[#allocation2 + $0x28] sm:$0xff] 0.0
      %155 = vst [vmem:[#allocation2 + $0x30] sm:$0xff] 0.0
      %156 = vst [vmem:[#allocation2 + $0x38] sm:$0xff] 0.0
      %157 = vst [vmem:[#allocation2 + $0x40] sm:$0xff] 0.0
      %158 = vst [vmem:[#allocation2 + $0x48] sm:$0xff] 0.0
      %159 = vst [vmem:[#allocation2 + $0x50] sm:$0xff] 0.0
      %160 = vst [vmem:[#allocation2 + $0x58] sm:$0xff] 0.0
      %161 = vst [vmem:[#allocation2 + $0x60] sm:$0xff] 0.0
      %162 = vst [vmem:[#allocation2 + $0x68] sm:$0xff] 0.0
      %163 = vst [vmem:[#allocation2 + $0x70] sm:$0xff] 0.0
      %164 = vst [vmem:[#allocation2 + $0x78] sm:$0xff] 0.0
      %vm165 = vcmask 7168
      %166 = vst.msk [vmem:[#allocation3] sm:$0xff] %vm165, 0.0
      %167 = vst.msk [vmem:[#allocation3 + $0x8] sm:$0xff] %vm165, 0.0
      %168 = vst.msk [vmem:[#allocation3 + $0x10] sm:$0xff] %vm165, 0.0
      %169 = vst.msk [vmem:[#allocation3 + $0x18] sm:$0xff] %vm165, 0.0
      %170 = vst.msk [vmem:[#allocation3 + $0x20] sm:$0xff] %vm165, 0.0
      %171 = vst.msk [vmem:[#allocation3 + $0x28] sm:$0xff] %vm165, 0.0
      %172 = vst.msk [vmem:[#allocation3 + $0x30] sm:$0xff] %vm165, 0.0
      %173 = vst.msk [vmem:[#allocation3 + $0x38] sm:$0xff] %vm165, 0.0
      %174 = vst.msk [vmem:[#allocation3 + $0x40] sm:$0xff] %vm165, 0.0
      %175 = vst.msk [vmem:[#allocation3 + $0x48] sm:$0xff] %vm165, 0.0
      %176 = vst.msk [vmem:[#allocation3 + $0x50] sm:$0xff] %vm165, 0.0
      %177 = vst.msk [vmem:[#allocation3 + $0x58] sm:$0xff] %vm165, 0.0
      %178 = vst.msk [vmem:[#allocation3 + $0x60] sm:$0xff] %vm165, 0.0
      %179 = vst.msk [vmem:[#allocation3 + $0x68] sm:$0xff] %vm165, 0.0
      %180 = vst.msk [vmem:[#allocation3 + $0x70] sm:$0xff] %vm165, 0.0
      %181 = vst.msk [vmem:[#allocation3 + $0x78] sm:$0xff] %vm165, 0.0
    $region85: #{tpu_custom_call.1} parent=1 // pred_fallthru
      _
    %v182 = vld [vmem:[%s0] sm:$0xf]
    %v183 = vld [vmem:[%s0 + $0x4] sm:$0xf]
    %v184 = vld [vmem:[%s0 + $0x8] sm:$0xf]
    %v185 = vld [vmem:[%s0 + $0xc] sm:$0xf]
    %v186 = vld [vmem:[%s0 + $0x10] sm:$0xf]
    %v187 = vld [vmem:[%s0 + $0x14] sm:$0xf]
    %v188 = vld [vmem:[%s0 + $0x18] sm:$0xf]
    %v189 = vld [vmem:[%s0 + $0x1c] sm:$0xf]
    %v190 = vld [vmem:[%s0 + $0x20] sm:$0xf]
    %v191 = vld [vmem:[%s0 + $0x24] sm:$0xf]
    %v192 = vld [vmem:[%s0 + $0x28] sm:$0xf]
    %v193 = vld [vmem:[%s0 + $0x2c] sm:$0xf]
    %v194 = vld [vmem:[%s0 + $0x30] sm:$0xf]
    %v195 = vld [vmem:[%s0 + $0x34] sm:$0xf]
    %v196 = vld [vmem:[%s0 + $0x38] sm:$0xf]
    %v197 = vld [vmem:[%s0 + $0x3c] sm:$0xf]
    %v198 = vld [vmem:[%s1] sm:$0xf]
    %v199 = vld [vmem:[%s1 + $0x4] sm:$0xf]
    %v216 = vunpack.c.l.b16 %v182
    %v217 = vunpack.c.l.b16 %v183
    %v218 = vunpack.c.l.b16 %v184
    %v219 = vunpack.c.l.b16 %v185
    %v220 = vunpack.c.l.b16 %v186
    %v221 = vunpack.c.l.b16 %v187
    %v222 = vunpack.c.l.b16 %v188
    %v223 = vunpack.c.l.b16 %v189
    %v224 = vunpack.c.l.b16 %v190
    %v225 = vunpack.c.l.b16 %v191
    %v226 = vunpack.c.l.b16 %v192
    %v227 = vunpack.c.l.b16 %v193
    %v228 = vunpack.c.l.b16 %v194
    %v229 = vunpack.c.l.b16 %v195
    %v230 = vunpack.c.l.b16 %v196
    %v231 = vunpack.c.l.b16 %v197
    %v232 = vpack.c.b16 %v217, %v216
    %v233 = vpack.c.b16 %v219, %v218
    %v234 = vpack.c.b16 %v221, %v220
    %v235 = vpack.c.b16 %v223, %v222
    %v236 = vpack.c.b16 %v225, %v224
    %v237 = vpack.c.b16 %v227, %v226
    %v238 = vpack.c.b16 %v229, %v228
    %v239 = vpack.c.b16 %v231, %v230
    %v242 = vunpack.c.l.b16 %v198
    %v243 = vunpack.c.l.b16 %v199
    %v244 = vpack.c.b16 %v243, %v242
    %vm246 = vcmask 130048
    %v248 = vsel %vm246, %v232, 0
    %v251 = vsel %vm246, %v233, 0
    %v254 = vsel %vm246, %v234, 0
    %v257 = vsel %vm246, %v235, 0
    %v260 = vsel %vm246, %v236, 0
    %v263 = vsel %vm246, %v237, 0
    %v266 = vsel %vm246, %v238, 0
    %v269 = vsel %vm246, %v239, 0
    %271 = vmatprep.subr.bf16.mxu0 0
    %272 = vmatpush1.bf16.msra.mxu0 %v244
    %273 = vmatprep.subr.bf16.mxu0 0
    %274 = vmatpush1.bf16.msra.mxu0 0
    %275 = vmatprep.subr.bf16.mxu0 0
    %276 = vmatpush1.bf16.msra.mxu0 0
    %277 = vmatprep.subr.bf16.mxu0 0
    %278 = vmatpush1.bf16.msra.mxu0 0
    %279 = vmatprep.subr.bf16.mxu0 0
    %280 = vmatpush1.bf16.msra.mxu0 0
    %281 = vmatprep.subr.bf16.mxu0 0
    %282 = vmatpush1.bf16.msra.mxu0 0
    %283 = vmatprep.subr.bf16.mxu0 0
    %284 = vmatpush1.bf16.msra.mxu0 0
    %285 = vmatprep.subr.bf16.mxu0 0
    %286 = vmatpush1.bf16.msra.mxu0 0
    %287 = vmatprep.subr.bf16.mxu0 0
    %288 = vmatpush1.bf16.msra.mxu0 0
    %289 = vmatprep.subr.bf16.mxu0 0
    %290 = vmatpush1.bf16.msra.mxu0 0
    %291 = vmatprep.subr.bf16.mxu0 0
    %292 = vmatpush1.bf16.msra.mxu0 0
    %293 = vmatprep.subr.bf16.mxu0 0
    %294 = vmatpush1.bf16.msra.mxu0 0
    %295 = vmatprep.subr.bf16.mxu0 0
    %296 = vmatpush1.bf16.msra.mxu0 0
    %297 = vmatprep.subr.bf16.mxu0 0
    %298 = vmatpush1.bf16.msra.mxu0 0
    %299 = vmatprep.subr.bf16.mxu0 0
    %300 = vmatpush1.bf16.msra.mxu0 0
    %301 = vmatprep.subr.bf16.mxu0 0
    %302 = vmatpush1.bf16.msra.mxu0 0
    %303 = vmatprep.mubr.bf16.mxu0 0
    %304 = vmatmul.mubr.bf16.gmra.mrb[0].mxu0 %v248
    %v305 = vpop.f32.mrb[0].mxu0
    %v306 = vadd.f32 0.0, %v305
    %v307 = vpop.f32.mrb[0].mxu0
    %v308 = vpop.f32.mrb[0].mxu0
    %v309 = vadd.f32 0.0, %v308
    %v310 = vpop.f32.mrb[0].mxu0
    %311 = vmatprep.mubr.bf16.mxu0 0
    %312 = vmatmul.mubr.bf16.gmra.mrb[0].mxu0 %v251
    %v313 = vpop.f32.mrb[0].mxu0
    %v314 = vadd.f32 0.0, %v313
    %v315 = vpop.f32.mrb[0].mxu0
    %v316 = vpop.f32.mrb[0].mxu0
    %v317 = vadd.f32 0.0, %v316
    %v318 = vpop.f32.mrb[0].mxu0
    %319 = vmatprep.mubr.bf16.mxu0 0
    %320 = vmatmul.mubr.bf16.gmra.mrb[0].mxu0 %v254
    %v321 = vpop.f32.mrb[0].mxu0
    %v322 = vadd.f32 0.0, %v321
    %v323 = vpop.f32.mrb[0].mxu0
    %v324 = vpop.f32.mrb[0].mxu0
    %v325 = vadd.f32 0.0, %v324
    %v326 = vpop.f32.mrb[0].mxu0
    %327 = vmatprep.mubr.bf16.mxu0 0
    %328 = vmatmul.mubr.bf16.gmra.mrb[0].mxu0 %v257
    %v329 = vpop.f32.mrb[0].mxu0
    %v330 = vadd.f32 0.0, %v329
    %v331 = vpop.f32.mrb[0].mxu0
    %v332 = vpop.f32.mrb[0].mxu0
    %v333 = vadd.f32 0.0, %v332
    %v334 = vpop.f32.mrb[0].mxu0
    %335 = vmatprep.mubr.bf16.mxu0 0
    %336 = vmatmul.mubr.bf16.gmra.mrb[0].mxu0 %v260
    %v337 = vpop.f32.mrb[0].mxu0
    %v338 = vadd.f32 0.0, %v337
    %v339 = vpop.f32.mrb[0].mxu0
    %v340 = vpop.f32.mrb[0].mxu0
    %v341 = vadd.f32 0.0, %v340
    %v342 = vpop.f32.mrb[0].mxu0
    %343 = vmatprep.mubr.bf16.mxu0 0
    %344 = vmatmul.mubr.bf16.gmra.mrb[0].mxu0 %v263
    %v345 = vpop.f32.mrb[0].mxu0
    %v346 = vadd.f32 0.0, %v345
    %v347 = vpop.f32.mrb[0].mxu0
    %v348 = vpop.f32.mrb[0].mxu0
    %v349 = vadd.f32 0.0, %v348
    %v350 = vpop.f32.mrb[0].mxu0
    %351 = vmatprep.mubr.bf16.mxu0 0
    %352 = vmatmul.mubr.bf16.gmra.mrb[0].mxu0 %v266
    %v353 = vpop.f32.mrb[0].mxu0
    %v354 = vadd.f32 0.0, %v353
    %v355 = vpop.f32.mrb[0].mxu0
    %v356 = vpop.f32.mrb[0].mxu0
    %v357 = vadd.f32 0.0, %v356
    %v358 = vpop.f32.mrb[0].mxu0
    %359 = vmatprep.mubr.bf16.mxu0 0
    %360 = vmatmul.mubr.bf16.gmra.mrb[0].mxu0 %v269
    %v361 = vpop.f32.mrb[0].mxu0
    %v362 = vadd.f32 0.0, %v361
    %v363 = vpop.f32.mrb[0].mxu0
    %v364 = vpop.f32.mrb[0].mxu0
    %v365 = vadd.f32 0.0, %v364
    %v366 = vpop.f32.mrb[0].mxu0
    %367 = vdwg.mxu0
    %v368 = vmul.f32 %v306, 0.31622776
    %v369 = vmul.f32 %v309, 0.31622776
    %v370 = vmul.f32 %v314, 0.31622776
    %v371 = vmul.f32 %v317, 0.31622776
    %v372 = vmul.f32 %v322, 0.31622776
    %v373 = vmul.f32 %v325, 0.31622776
    %v374 = vmul.f32 %v330, 0.31622776
    %v375 = vmul.f32 %v333, 0.31622776
    %v376 = vmul.f32 %v338, 0.31622776
    %v377 = vmul.f32 %v341, 0.31622776
    %v378 = vmul.f32 %v346, 0.31622776
    %v379 = vmul.f32 %v349, 0.31622776
    %v380 = vmul.f32 %v354, 0.31622776
    %v381 = vmul.f32 %v357, 0.31622776
    %v382 = vmul.f32 %v362, 0.31622776
    %v383 = vmul.f32 %v365, 0.31622776
    %v384 = vmul.f32 %v368, 1.442695
    %v385 = vpow.pop %v384
    %v386 = vmul.f32 %v369, 1.442695
    %v387 = vpow.pop %v386
    %v388 = vmul.f32 %v370, 1.442695
    %v389 = vpow.pop %v388
    %v390 = vmul.f32 %v371, 1.442695
    %v391 = vpow.pop %v390
    %v392 = vmul.f32 %v372, 1.442695
    %v393 = vpow.pop %v392
    %v394 = vmul.f32 %v373, 1.442695
    %v395 = vpow.pop %v394
    %v396 = vmul.f32 %v374, 1.442695
    %v397 = vpow.pop %v396
    %v398 = vmul.f32 %v375, 1.442695
    %v399 = vpow.pop %v398
    %v400 = vmul.f32 %v376, 1.442695
    %v401 = vpow.pop %v400
    %v402 = vmul.f32 %v377, 1.442695
    %v403 = vpow.pop %v402
    %v404 = vmul.f32 %v378, 1.442695
    %v405 = vpow.pop %v404
    %v406 = vmul.f32 %v379, 1.442695
    %v407 = vpow.pop %v406
    %v408 = vmul.f32 %v380, 1.442695
    %v409 = vpow.pop %v408
    %v410 = vmul.f32 %v381, 1.442695
    %v411 = vpow.pop %v410
    %v412 = vmul.f32 %v382, 1.442695
    %v413 = vpow.pop %v412
    %v414 = vmul.f32 %v383, 1.442695
    %v415 = vpow.pop %v414
    %v416 = vadd.f32 %v385, 1.0
    %v417 = vadd.f32 %v387, 1.0
    %v418 = vadd.f32 %v389, 1.0
    %v419 = vadd.f32 %v391, 1.0
    %v420 = vadd.f32 %v393, 1.0
    %v421 = vadd.f32 %v395, 1.0
    %v422 = vadd.f32 %v397, 1.0
    %v423 = vadd.f32 %v399, 1.0
    %v424 = vadd.f32 %v401, 1.0
    %v425 = vadd.f32 %v403, 1.0
    %v426 = vadd.f32 %v405, 1.0
    %v427 = vadd.f32 %v407, 1.0
    %v428 = vadd.f32 %v409, 1.0
    %v429 = vadd.f32 %v411, 1.0
    %v430 = vadd.f32 %v413, 1.0
    %v431 = vadd.f32 %v415, 1.0
    %v432 = vrcp.pop %v416
    %v433 = vmul.f32 1.0, %v432
    %v434 = vrcp.pop %v417
    %v435 = vmul.f32 1.0, %v434
    %v436 = vrcp.pop %v418
    %v437 = vmul.f32 1.0, %v436
    %v438 = vrcp.pop %v419
    %v439 = vmul.f32 1.0, %v438
    %v440 = vrcp.pop %v420
    %v441 = vmul.f32 1.0, %v440
    %v442 = vrcp.pop %v421
    %v443 = vmul.f32 1.0, %v442
    %v444 = vrcp.pop %v422
    %v445 = vmul.f32 1.0, %v444
    %v446 = vrcp.pop %v423
    %v447 = vmul.f32 1.0, %v446
    %v448 = vrcp.pop %v424
    %v449 = vmul.f32 1.0, %v448
    %v450 = vrcp.pop %v425
    %v451 = vmul.f32 1.0, %v450
    %v452 = vrcp.pop %v426
    %v453 = vmul.f32 1.0, %v452
    %v454 = vrcp.pop %v427
    %v455 = vmul.f32 1.0, %v454
    %v456 = vrcp.pop %v428
    %v457 = vmul.f32 1.0, %v456
    %v458 = vrcp.pop %v429
    %v459 = vmul.f32 1.0, %v458
    %v460 = vrcp.pop %v430
    %v461 = vmul.f32 1.0, %v460
    %v462 = vrcp.pop %v431
    %v463 = vmul.f32 1.0, %v462
    %v464 = vsub.f32 1.0, %v433
    %v465 = vsub.f32 1.0, %v435
    %v466 = vsub.f32 1.0, %v437
    %v467 = vsub.f32 1.0, %v439
    %v468 = vsub.f32 1.0, %v441
    %v469 = vsub.f32 1.0, %v443
    %v470 = vsub.f32 1.0, %v445
    %v471 = vsub.f32 1.0, %v447
    %v472 = vsub.f32 1.0, %v449
    %v473 = vsub.f32 1.0, %v451
    %v474 = vsub.f32 1.0, %v453
    %v475 = vsub.f32 1.0, %v455
    %v476 = vsub.f32 1.0, %v457
    %v477 = vsub.f32 1.0, %v459
    %v478 = vsub.f32 1.0, %v461
    %v479 = vsub.f32 1.0, %v463
    %v480 = vmax.f32 %v464, 0.001
    %v481 = vmax.f32 %v465, 0.001
    %v482 = vmax.f32 %v466, 0.001
    %v483 = vmax.f32 %v467, 0.001
    %v484 = vmax.f32 %v468, 0.001
    %v485 = vmax.f32 %v469, 0.001
    %v486 = vmax.f32 %v470, 0.001
    %v487 = vmax.f32 %v471, 0.001
    %v488 = vmax.f32 %v472, 0.001
    %v489 = vmax.f32 %v473, 0.001
    %v490 = vmax.f32 %v474, 0.001
    %v491 = vmax.f32 %v475, 0.001
    %v492 = vmax.f32 %v476, 0.001
    %v493 = vmax.f32 %v477, 0.001
    %v494 = vmax.f32 %v478, 0.001
    %v495 = vmax.f32 %v479, 0.001
    %v496 = vmin.f32 %v480, 0.999
    %v497 = vmin.f32 %v481, 0.999
    %v498 = vmin.f32 %v482, 0.999
    %v499 = vmin.f32 %v483, 0.999
    %v500 = vmin.f32 %v484, 0.999
    %v501 = vmin.f32 %v485, 0.999
    %v502 = vmin.f32 %v486, 0.999
    %v503 = vmin.f32 %v487, 0.999
    %v504 = vmin.f32 %v488, 0.999
    %v505 = vmin.f32 %v489, 0.999
    %v506 = vmin.f32 %v490, 0.999
    %v507 = vmin.f32 %v491, 0.999
    %v508 = vmin.f32 %v492, 0.999
    %v509 = vmin.f32 %v493, 0.999
    %v510 = vmin.f32 %v494, 0.999
    %v511 = vmin.f32 %v495, 0.999
    %512 = vst [vmem:[#allocation16] sm:$0xff] %v496
    %513 = vst [vmem:[#allocation16 + $0x8] sm:$0xff] %v497
    %514 = vst [vmem:[#allocation16 + $0x10] sm:$0xff] %v498
    %515 = vst [vmem:[#allocation16 + $0x18] sm:$0xff] %v499
    %516 = vst [vmem:[#allocation16 + $0x20] sm:$0xff] %v500
    %517 = vst [vmem:[#allocation16 + $0x28] sm:$0xff] %v501
    %518 = vst [vmem:[#allocation16 + $0x30] sm:$0xff] %v502
    %519 = vst [vmem:[#allocation16 + $0x38] sm:$0xff] %v503
    %520 = vst [vmem:[#allocation16 + $0x40] sm:$0xff] %v504
    %521 = vst [vmem:[#allocation16 + $0x48] sm:$0xff] %v505
    %522 = vst [vmem:[#allocation16 + $0x50] sm:$0xff] %v506
    %523 = vst [vmem:[#allocation16 + $0x58] sm:$0xff] %v507
    %524 = vst [vmem:[#allocation16 + $0x60] sm:$0xff] %v508
    %525 = vst [vmem:[#allocation16 + $0x68] sm:$0xff] %v509
    %526 = vst [vmem:[#allocation16 + $0x70] sm:$0xff] %v510
    %527 = vst [vmem:[#allocation16 + $0x78] sm:$0xff] %v511
    %v528 = vmax.f32 %v368, -6.906755
    %v529 = vmax.f32 %v369, -6.906755
    %v530 = vmax.f32 %v370, -6.906755
    %v531 = vmax.f32 %v371, -6.906755
    %v532 = vmax.f32 %v372, -6.906755
    %v533 = vmax.f32 %v373, -6.906755
    %v534 = vmax.f32 %v374, -6.906755
    %v535 = vmax.f32 %v375, -6.906755
    %v536 = vmax.f32 %v376, -6.906755
    %v537 = vmax.f32 %v377, -6.906755
    %v538 = vmax.f32 %v378, -6.906755
    %v539 = vmax.f32 %v379, -6.906755
    %v540 = vmax.f32 %v380, -6.906755
    %v541 = vmax.f32 %v381, -6.906755
    %v542 = vmax.f32 %v382, -6.906755
    %v543 = vmax.f32 %v383, -6.906755
    %v544 = vmin.f32 %v528, 6.906755
    %v545 = vmin.f32 %v529, 6.906755
    %v546 = vmin.f32 %v530, 6.906755
    %v547 = vmin.f32 %v531, 6.906755
    %v548 = vmin.f32 %v532, 6.906755
    %v549 = vmin.f32 %v533, 6.906755
    %v550 = vmin.f32 %v534, 6.906755
    %v551 = vmin.f32 %v535, 6.906755
    %v552 = vmin.f32 %v536, 6.906755
    %v553 = vmin.f32 %v537, 6.906755
    %v554 = vmin.f32 %v538, 6.906755
    %v555 = vmin.f32 %v539, 6.906755
    %v556 = vmin.f32 %v540, 6.906755
    %v557 = vmin.f32 %v541, 6.906755
    %v558 = vmin.f32 %v542, 6.906755
    %v559 = vmin.f32 %v543, 6.906755
    %v560 = vld [vmem:[#allocation4] sm:$0xff]
    %v561 = vld [vmem:[#allocation4 + $0x8] sm:$0xff]
    %v562 = vld [vmem:[#allocation4 + $0x10] sm:$0xff]
    %v563 = vld [vmem:[#allocation4 + $0x18] sm:$0xff]
    %v564 = vld [vmem:[#allocation4 + $0x20] sm:$0xff]
    %v565 = vld [vmem:[#allocation4 + $0x28] sm:$0xff]
    %v566 = vld [vmem:[#allocation4 + $0x30] sm:$0xff]
    %v567 = vld [vmem:[#allocation4 + $0x38] sm:$0xff]
    %v568 = vld [vmem:[#allocation4 + $0x40] sm:$0xff]
    %v569 = vld [vmem:[#allocation4 + $0x48] sm:$0xff]
    %v570 = vld [vmem:[#allocation4 + $0x50] sm:$0xff]
    %v571 = vld [vmem:[#allocation4 + $0x58] sm:$0xff]
    %v572 = vld [vmem:[#allocation4 + $0x60] sm:$0xff]
    %v573 = vld [vmem:[#allocation4 + $0x68] sm:$0xff]
    %v574 = vld [vmem:[#allocation4 + $0x70] sm:$0xff]
    %v575 = vld [vmem:[#allocation4 + $0x78] sm:$0xff]
    %v576 = vadd.f32 %v544, %v560
    %v577 = vadd.f32 %v545, %v561
    %v578 = vadd.f32 %v546, %v562
    %v579 = vadd.f32 %v547, %v563
    %v580 = vadd.f32 %v548, %v564
    %v581 = vadd.f32 %v549, %v565
    %v582 = vadd.f32 %v550, %v566
    %v583 = vadd.f32 %v551, %v567
    %v584 = vadd.f32 %v552, %v568
    %v585 = vadd.f32 %v553, %v569
    %v586 = vadd.f32 %v554, %v570
    %v587 = vadd.f32 %v555, %v571
    %v588 = vadd.f32 %v556, %v572
    %v589 = vadd.f32 %v557, %v573
    %v590 = vadd.f32 %v558, %v574
    %v591 = vadd.f32 %v559, %v575
    %v592 = vmul.f32 %v576, 20.0
    %v593 = vmul.f32 %v577, 20.0
    %v594 = vmul.f32 %v578, 20.0
    %v595 = vmul.f32 %v579, 20.0
    %v596 = vmul.f32 %v580, 20.0
    %v597 = vmul.f32 %v581, 20.0
    %v598 = vmul.f32 %v582, 20.0
    %v599 = vmul.f32 %v583, 20.0
    %v600 = vmul.f32 %v584, 20.0
    %v601 = vmul.f32 %v585, 20.0
    %v602 = vmul.f32 %v586, 20.0
    %v603 = vmul.f32 %v587, 20.0
    %v604 = vmul.f32 %v588, 20.0
    %v605 = vmul.f32 %v589, 20.0
    %v606 = vmul.f32 %v590, 20.0
    %v607 = vmul.f32 %v591, 20.0
    %v608 = vsub.f32 0.0, %v592
    %v609 = vsub.f32 0.0, %v593
    %v610 = vsub.f32 0.0, %v594
    %v611 = vsub.f32 0.0, %v595
    %v612 = vsub.f32 0.0, %v596
    %v613 = vsub.f32 0.0, %v597
    %v614 = vsub.f32 0.0, %v598
    %v615 = vsub.f32 0.0, %v599
    %v616 = vsub.f32 0.0, %v600
    %v617 = vsub.f32 0.0, %v601
    %v618 = vsub.f32 0.0, %v602
    %v619 = vsub.f32 0.0, %v603
    %v620 = vsub.f32 0.0, %v604
    %v621 = vsub.f32 0.0, %v605
    %v622 = vsub.f32 0.0, %v606
    %v623 = vsub.f32 0.0, %v607
    %v624 = vmul.f32 %v608, 1.442695
    %v625 = vpow.pop %v624
    %v626 = vmul.f32 %v609, 1.442695
    %v627 = vpow.pop %v626
    %v628 = vmul.f32 %v610, 1.442695
    %v629 = vpow.pop %v628
    %v630 = vmul.f32 %v611, 1.442695
    %v631 = vpow.pop %v630
    %v632 = vmul.f32 %v612, 1.442695
    %v633 = vpow.pop %v632
    %v634 = vmul.f32 %v613, 1.442695
    %v635 = vpow.pop %v634
    %v636 = vmul.f32 %v614, 1.442695
    %v637 = vpow.pop %v636
    %v638 = vmul.f32 %v615, 1.442695
    %v639 = vpow.pop %v638
    %v640 = vmul.f32 %v616, 1.442695
    %v641 = vpow.pop %v640
    %v642 = vmul.f32 %v617, 1.442695
    %v643 = vpow.pop %v642
    %v644 = vmul.f32 %v618, 1.442695
    %v645 = vpow.pop %v644
    %v646 = vmul.f32 %v619, 1.442695
    %v647 = vpow.pop %v646
    %v648 = vmul.f32 %v620, 1.442695
    %v649 = vpow.pop %v648
    %v650 = vmul.f32 %v621, 1.442695
    %v651 = vpow.pop %v650
    %v652 = vmul.f32 %v622, 1.442695
    %v653 = vpow.pop %v652
    %v654 = vmul.f32 %v623, 1.442695
    %v655 = vpow.pop %v654
    %v656 = vadd.f32 %v625, 1.0
    %v657 = vadd.f32 %v627, 1.0
    %v658 = vadd.f32 %v629, 1.0
    %v659 = vadd.f32 %v631, 1.0
    %v660 = vadd.f32 %v633, 1.0
    %v661 = vadd.f32 %v635, 1.0
    %v662 = vadd.f32 %v637, 1.0
    %v663 = vadd.f32 %v639, 1.0
    %v664 = vadd.f32 %v641, 1.0
    %v665 = vadd.f32 %v643, 1.0
    %v666 = vadd.f32 %v645, 1.0
    %v667 = vadd.f32 %v647, 1.0
    %v668 = vadd.f32 %v649, 1.0
    %v669 = vadd.f32 %v651, 1.0
    %v670 = vadd.f32 %v653, 1.0
    %v671 = vadd.f32 %v655, 1.0
    %v672 = vrcp.pop %v656
    %v673 = vmul.f32 1.0, %v672
    %v674 = vrcp.pop %v657
    %v675 = vmul.f32 1.0, %v674
    %v676 = vrcp.pop %v658
    %v677 = vmul.f32 1.0, %v676
    %v678 = vrcp.pop %v659
    %v679 = vmul.f32 1.0, %v678
    %v680 = vrcp.pop %v660
    %v681 = vmul.f32 1.0, %v680
    %v682 = vrcp.pop %v661
    %v683 = vmul.f32 1.0, %v682
    %v684 = vrcp.pop %v662
    %v685 = vmul.f32 1.0, %v684
    %v686 = vrcp.pop %v663
    %v687 = vmul.f32 1.0, %v686
    %v688 = vrcp.pop %v664
    %v689 = vmul.f32 1.0, %v688
    %v690 = vrcp.pop %v665
    %v691 = vmul.f32 1.0, %v690
    %v692 = vrcp.pop %v666
    %v693 = vmul.f32 1.0, %v692
    %v694 = vrcp.pop %v667
    %v695 = vmul.f32 1.0, %v694
    %v696 = vrcp.pop %v668
    %v697 = vmul.f32 1.0, %v696
    %v698 = vrcp.pop %v669
    %v699 = vmul.f32 1.0, %v698
    %v700 = vrcp.pop %v670
    %v701 = vmul.f32 1.0, %v700
    %v702 = vrcp.pop %v671
    %v703 = vmul.f32 1.0, %v702
    %704 = vst [vmem:[#allocation17] sm:$0xff] %v673
    %705 = vst [vmem:[#allocation17 + $0x8] sm:$0xff] %v675
    %706 = vst [vmem:[#allocation17 + $0x10] sm:$0xff] %v677
    %707 = vst [vmem:[#allocation17 + $0x18] sm:$0xff] %v679
    %708 = vst [vmem:[#allocation17 + $0x20] sm:$0xff] %v681
    %709 = vst [vmem:[#allocation17 + $0x28] sm:$0xff] %v683
    %710 = vst [vmem:[#allocation17 + $0x30] sm:$0xff] %v685
    %711 = vst [vmem:[#allocation17 + $0x38] sm:$0xff] %v687
    %712 = vst [vmem:[#allocation17 + $0x40] sm:$0xff] %v689
    %713 = vst [vmem:[#allocation17 + $0x48] sm:$0xff] %v691
    %714 = vst [vmem:[#allocation17 + $0x50] sm:$0xff] %v693
    %715 = vst [vmem:[#allocation17 + $0x58] sm:$0xff] %v695
    %716 = vst [vmem:[#allocation17 + $0x60] sm:$0xff] %v697
    %717 = vst [vmem:[#allocation17 + $0x68] sm:$0xff] %v699
    %718 = vst [vmem:[#allocation17 + $0x70] sm:$0xff] %v701
    %719 = vst [vmem:[#allocation17 + $0x78] sm:$0xff] %v703
    %p720 = scmp.lt.s32.totalorder 0, 1
    // Predicated region
    $region86: #{tpu_custom_call.1} parent=1 // pred_check
      %p721 = pneg %p720
    $region87: #{tpu_custom_call.1} parent=1 // pred_check_branch
      %723 = sbr.rel (%p721) target = $region89
    $region88: #{tpu_custom_call.1} parent=1 // pred_region
      %v724 = vmul.f32 %v385, %v673
      %v725 = vmul.f32 %v387, %v675
      %v726 = vmul.f32 %v389, %v677
      %v727 = vmul.f32 %v391, %v679
      %v728 = vmul.f32 %v393, %v681
      %v729 = vmul.f32 %v395, %v683
      %v730 = vmul.f32 %v397, %v685
      %v731 = vmul.f32 %v399, %v687
      %v732 = vmul.f32 %v401, %v689
      %v733 = vmul.f32 %v403, %v691
      %v734 = vmul.f32 %v405, %v693
      %v735 = vmul.f32 %v407, %v695
      %v736 = vmul.f32 %v409, %v697
      %v737 = vmul.f32 %v411, %v699
      %v738 = vmul.f32 %v413, %v701
      %v739 = vmul.f32 %v415, %v703
      %v740 = vld [vmem:[%s3] sm:$0x1]
      %v742 = vlaneseq
      %v743 = vshrl.u32 %v742, 7
      %v744 = vsub.s32 0, %v743
      %v745 = vrot.slane %v740, %v744
      %v747 = vmul.f32 %v724, %v745
      %v748 = vmul.f32 %v725, %v745
      %v749 = vmul.f32 %v726, %v745
      %v750 = vmul.f32 %v727, %v745
      %v751 = vmul.f32 %v728, %v745
      %v752 = vmul.f32 %v729, %v745
      %v753 = vmul.f32 %v730, %v745
      %v754 = vmul.f32 %v731, %v745
      %v755 = vmul.f32 %v732, %v745
      %v756 = vmul.f32 %v733, %v745
      %v757 = vmul.f32 %v734, %v745
      %v758 = vmul.f32 %v735, %v745
      %v759 = vmul.f32 %v736, %v745
      %v760 = vmul.f32 %v737, %v745
      %v761 = vmul.f32 %v738, %v745
      %v762 = vmul.f32 %v739, %v745
      %v763 = vld [vmem:[#allocation3] sm:$0xff]
      %v764 = vld [vmem:[#allocation3 + $0x8] sm:$0xff]
      %v765 = vld [vmem:[#allocation3 + $0x10] sm:$0xff]
      %v766 = vld [vmem:[#allocation3 + $0x18] sm:$0xff]
      %v767 = vld [vmem:[#allocation3 + $0x20] sm:$0xff]
      %v768 = vld [vmem:[#allocation3 + $0x28] sm:$0xff]
      %v769 = vld [vmem:[#allocation3 + $0x30] sm:$0xff]
      %v770 = vld [vmem:[#allocation3 + $0x38] sm:$0xff]
      %v771 = vld [vmem:[#allocation3 + $0x40] sm:$0xff]
      %v772 = vld [vmem:[#allocation3 + $0x48] sm:$0xff]
      %v773 = vld [vmem:[#allocation3 + $0x50] sm:$0xff]
      %v774 = vld [vmem:[#allocation3 + $0x58] sm:$0xff]
      %v775 = vld [vmem:[#allocation3 + $0x60] sm:$0xff]
      %v776 = vld [vmem:[#allocation3 + $0x68] sm:$0xff]
      %v777 = vld [vmem:[#allocation3 + $0x70] sm:$0xff]
      %v778 = vld [vmem:[#allocation3 + $0x78] sm:$0xff]
      %779 = vadd.xlane.f32.xlu0 %v747
      %v780 = vpop.xlane.xlu0 %779
      %781 = vadd.xlane.f32.xlu0 %v748
      %v782 = vpop.xlane.xlu0 %781
      %783 = vadd.xlane.f32.xlu0 %v749
      %v784 = vpop.xlane.xlu0 %783
      %785 = vadd.xlane.f32.xlu0 %v750
      %v786 = vpop.xlane.xlu0 %785
      %787 = vadd.xlane.f32.xlu0 %v751
      %v788 = vpop.xlane.xlu0 %787
      %789 = vadd.xlane.f32.xlu0 %v752
      %v790 = vpop.xlane.xlu0 %789
      %791 = vadd.xlane.f32.xlu0 %v753
      %v792 = vpop.xlane.xlu0 %791
      %793 = vadd.xlane.f32.xlu0 %v754
      %v794 = vpop.xlane.xlu0 %793
      %795 = vadd.xlane.f32.xlu0 %v755
      %v796 = vpop.xlane.xlu0 %795
      %797 = vadd.xlane.f32.xlu0 %v756
      %v798 = vpop.xlane.xlu0 %797
      %799 = vadd.xlane.f32.xlu0 %v757
      %v800 = vpop.xlane.xlu0 %799
      %801 = vadd.xlane.f32.xlu0 %v758
      %v802 = vpop.xlane.xlu0 %801
      %803 = vadd.xlane.f32.xlu0 %v759
      %v804 = vpop.xlane.xlu0 %803
      %805 = vadd.xlane.f32.xlu0 %v760
      %v806 = vpop.xlane.xlu0 %805
      %807 = vadd.xlane.f32.xlu0 %v761
      %v808 = vpop.xlane.xlu0 %807
      %809 = vadd.xlane.f32.xlu0 %v762
      %v810 = vpop.xlane.xlu0 %809
      %v811 = vadd.f32 %v763, %v780
      %v812 = vadd.f32 %v764, %v782
      %v813 = vadd.f32 %v765, %v784
      %v814 = vadd.f32 %v766, %v786
      %v815 = vadd.f32 %v767, %v788
      %v816 = vadd.f32 %v768, %v790
      %v817 = vadd.f32 %v769, %v792
      %v818 = vadd.f32 %v770, %v794
      %v819 = vadd.f32 %v771, %v796
      %v820 = vadd.f32 %v772, %v798
      %v821 = vadd.f32 %v773, %v800
      %v822 = vadd.f32 %v774, %v802
      %v823 = vadd.f32 %v775, %v804
      %v824 = vadd.f32 %v776, %v806
      %v825 = vadd.f32 %v777, %v808
      %v826 = vadd.f32 %v778, %v810
      %vm827 = vcmask 7168
      %828 = vst.msk [vmem:[#allocation3] sm:$0xff] %vm827, %v811
      %829 = vst.msk [vmem:[#allocation3 + $0x8] sm:$0xff] %vm827, %v812
      %830 = vst.msk [vmem:[#allocation3 + $0x10] sm:$0xff] %vm827, %v813
      %831 = vst.msk [vmem:[#allocation3 + $0x18] sm:$0xff] %vm827, %v814
      %832 = vst.msk [vmem:[#allocation3 + $0x20] sm:$0xff] %vm827, %v815
      %833 = vst.msk [vmem:[#allocation3 + $0x28] sm:$0xff] %vm827, %v816
      %834 = vst.msk [vmem:[#allocation3 + $0x30] sm:$0xff] %vm827, %v817
      %835 = vst.msk [vmem:[#allocation3 + $0x38] sm:$0xff] %vm827, %v818
      %836 = vst.msk [vmem:[#allocation3 + $0x40] sm:$0xff] %vm827, %v819
      %837 = vst.msk [vmem:[#allocation3 + $0x48] sm:$0xff] %vm827, %v820
      %838 = vst.msk [vmem:[#allocation3 + $0x50] sm:$0xff] %vm827, %v821
      %839 = vst.msk [vmem:[#allocation3 + $0x58] sm:$0xff] %vm827, %v822
      %840 = vst.msk [vmem:[#allocation3 + $0x60] sm:$0xff] %vm827, %v823
      %841 = vst.msk [vmem:[#allocation3 + $0x68] sm:$0xff] %vm827, %v824
      %842 = vst.msk [vmem:[#allocation3 + $0x70] sm:$0xff] %vm827, %v825
      %843 = vst.msk [vmem:[#allocation3 + $0x78] sm:$0xff] %vm827, %v826
      %v844 = vld [vmem:[#allocation2] sm:$0xff]
      %v845 = vld [vmem:[#allocation2 + $0x8] sm:$0xff]
      %v846 = vld [vmem:[#allocation2 + $0x10] sm:$0xff]
      %v847 = vld [vmem:[#allocation2 + $0x18] sm:$0xff]
      %v848 = vld [vmem:[#allocation2 + $0x20] sm:$0xff]
      %v849 = vld [vmem:[#allocation2 + $0x28] sm:$0xff]
      %v850 = vld [vmem:[#allocation2 + $0x30] sm:$0xff]
      %v851 = vld [vmem:[#allocation2 + $0x38] sm:$0xff]
      %v852 = vld [vmem:[#allocation2 + $0x40] sm:$0xff]
      %v853 = vld [vmem:[#allocation2 + $0x48] sm:$0xff]
      %v854 = vld [vmem:[#allocation2 + $0x50] sm:$0xff]
      %v855 = vld [vmem:[#allocation2 + $0x58] sm:$0xff]
      %v856 = vld [vmem:[#allocation2 + $0x60] sm:$0xff]
      %v857 = vld [vmem:[#allocation2 + $0x68] sm:$0xff]
      %v858 = vld [vmem:[#allocation2 + $0x70] sm:$0xff]
      %v859 = vld [vmem:[#allocation2 + $0x78] sm:$0xff]
      %v860 = vld [vmem:[#allocation7] sm:$0xff]
      %v861 = vld [vmem:[#allocation7 + $0x8] sm:$0xff]
      %v862 = vld [vmem:[#allocation7 + $0x10] sm:$0xff]
      %v863 = vld [vmem:[#allocation7 + $0x18] sm:$0xff]
      %v864 = vld [vmem:[#allocation7 + $0x20] sm:$0xff]
      %v865 = vld [vmem:[#allocation7 + $0x28] sm:$0xff]
      %v866 = vld [vmem:[#allocation7 + $0x30] sm:$0xff]
      %v867 = vld [vmem:[#allocation7 + $0x38] sm:$0xff]
      %v868 = vld [vmem:[#allocation7 + $0x40] sm:$0xff]
      %v869 = vld [vmem:[#allocation7 + $0x48] sm:$0xff]
      %v870 = vld [vmem:[#allocation7 + $0x50] sm:$0xff]
      %v871 = vld [vmem:[#allocation7 + $0x58] sm:$0xff]
      %v872 = vld [vmem:[#allocation7 + $0x60] sm:$0xff]
      %v873 = vld [vmem:[#allocation7 + $0x68] sm:$0xff]
      %v874 = vld [vmem:[#allocation7 + $0x70] sm:$0xff]
      %v875 = vld [vmem:[#allocation7 + $0x78] sm:$0xff]
      %876 = vmatprep.subr.mxu0 0.0
      %877 = vmatpush1.msra.mxu0 %v860
      %878 = vmatprep.subr.mxu0 0.0
      %879 = vmatpush1.msra.mxu0 %v861
      %880 = vmatprep.subr.mxu0 0.0
      %881 = vmatpush1.msra.mxu0 %v862
      %882 = vmatprep.subr.mxu0 0.0
      %883 = vmatpush1.msra.mxu0 %v863
      %884 = vmatprep.subr.mxu0 0.0
      %885 = vmatpush1.msra.mxu0 %v864
      %886 = vmatprep.subr.mxu0 0.0
      %887 = vmatpush1.msra.mxu0 %v865
      %888 = vmatprep.subr.mxu0 0.0
      %889 = vmatpush1.msra.mxu0 %v866
      %890 = vmatprep.subr.mxu0 0.0
      %891 = vmatpush1.msra.mxu0 %v867
      %892 = vmatprep.subr.mxu0 0.0
      %893 = vmatpush1.msra.mxu0 %v868
      %894 = vmatprep.subr.mxu0 0.0
      %895 = vmatpush1.msra.mxu0 %v869
      %896 = vmatprep.subr.mxu0 0.0
      %897 = vmatpush1.msra.mxu0 %v870
      %898 = vmatprep.subr.mxu0 0.0
      %899 = vmatpush1.msra.mxu0 %v871
      %900 = vmatprep.subr.mxu0 0.0
      %901 = vmatpush1.msra.mxu0 %v872
      %902 = vmatprep.subr.mxu0 0.0
      %903 = vmatpush1.msra.mxu0 %v873
      %904 = vmatprep.subr.mxu0 0.0
      %905 = vmatpush1.msra.mxu0 %v874
      %906 = vmatprep.subr.mxu0 0.0
      %907 = vmatpush1.msra.mxu0 %v875
      %908 = vmatprep.subr.mxu0 0.0
      %909 = vmatpush1.msra.mxu0 0.0
      %910 = vmatprep.subr.mxu0 0.0
      %911 = vmatpush1.msra.mxu0 0.0
      %912 = vmatprep.subr.mxu0 0.0
      %913 = vmatpush1.msra.mxu0 0.0
      %914 = vmatprep.subr.mxu0 0.0
      %915 = vmatpush1.msra.mxu0 0.0
      %916 = vmatprep.subr.mxu0 0.0
      %917 = vmatpush1.msra.mxu0 0.0
      %918 = vmatprep.subr.mxu0 0.0
      %919 = vmatpush1.msra.mxu0 0.0
      %920 = vmatprep.subr.mxu0 0.0
      %921 = vmatpush1.msra.mxu0 0.0
      %922 = vmatprep.subr.mxu0 0.0
      %923 = vmatpush1.msra.mxu0 0.0
      %924 = vmatprep.subr.mxu0 0.0
      %925 = vmatpush1.msra.mxu0 0.0
      %926 = vmatprep.subr.mxu0 0.0
      %927 = vmatpush1.msra.mxu0 0.0
      %928 = vmatprep.subr.mxu0 0.0
      %929 = vmatpush1.msra.mxu0 0.0
      %930 = vmatprep.subr.mxu0 0.0
      %931 = vmatpush1.msra.mxu0 0.0
      %932 = vmatprep.subr.mxu0 0.0
      %933 = vmatpush1.msra.mxu0 0.0
      %934 = vmatprep.subr.mxu0 0.0
      %935 = vmatpush1.msra.mxu0 0.0
      %936 = vmatprep.subr.mxu0 0.0
      %937 = vmatpush1.msra.mxu0 0.0
      %938 = vmatprep.subr.mxu0 0.0
      %939 = vmatpush1.msra.mxu0 0.0
      %940 = vmatprep.mubr.f32.mxu0 0.0
      %941 = vmatmul.mubr.f32.gmra.mrb[0].mxu0 %v747
      %v942 = vpop.f32.mrb[0].mxu0
      %v943 = vadd.f32 0.0, %v942
      %v944 = vpop.f32.mrb[0].mxu0
      %945 = vmatprep.mubr.f32.mxu0 0.0
      %946 = vmatmul.mubr.f32.gmra.mrb[0].mxu0 %v748
      %v947 = vpop.f32.mrb[0].mxu0
      %v948 = vadd.f32 0.0, %v947
      %v949 = vpop.f32.mrb[0].mxu0
      %950 = vmatprep.mubr.f32.mxu0 0.0
      %951 = vmatmul.mubr.f32.gmra.mrb[0].mxu0 %v749
      %v952 = vpop.f32.mrb[0].mxu0
      %v953 = vadd.f32 0.0, %v952
      %v954 = vpop.f32.mrb[0].mxu0
      %955 = vmatprep.mubr.f32.mxu0 0.0
      %956 = vmatmul.mubr.f32.gmra.mrb[0].mxu0 %v750
      %v957 = vpop.f32.mrb[0].mxu0
      %v958 = vadd.f32 0.0, %v957
      %v959 = vpop.f32.mrb[0].mxu0
      %960 = vmatprep.mubr.f32.mxu0 0.0
      %961 = vmatmul.mubr.f32.gmra.mrb[0].mxu0 %v751
      %v962 = vpop.f32.mrb[0].mxu0
      %v963 = vadd.f32 0.0, %v962
      %v964 = vpop.f32.mrb[0].mxu0
      %965 = vmatprep.mubr.f32.mxu0 0.0
      %966 = vmatmul.mubr.f32.gmra.mrb[0].mxu0 %v752
      %v967 = vpop.f32.mrb[0].mxu0
      %v968 = vadd.f32 0.0, %v967
      %v969 = vpop.f32.mrb[0].mxu0
      %970 = vmatprep.mubr.f32.mxu0 0.0
      %971 = vmatmul.mubr.f32.gmra.mrb[0].mxu0 %v753
      %v972 = vpop.f32.mrb[0].mxu0
      %v973 = vadd.f32 0.0, %v972
      %v974 = vpop.f32.mrb[0].mxu0
      %975 = vmatprep.mubr.f32.mxu0 0.0
      %976 = vmatmul.mubr.f32.gmra.mrb[0].mxu0 %v754
      %v977 = vpop.f32.mrb[0].mxu0
      %v978 = vadd.f32 0.0, %v977
      %v979 = vpop.f32.mrb[0].mxu0
      %980 = vmatprep.mubr.f32.mxu0 0.0
      %981 = vmatmul.mubr.f32.gmra.mrb[0].mxu0 %v755
      %v982 = vpop.f32.mrb[0].mxu0
      %v983 = vadd.f32 0.0, %v982
      %v984 = vpop.f32.mrb[0].mxu0
      %985 = vmatprep.mubr.f32.mxu0 0.0
      %986 = vmatmul.mubr.f32.gmra.mrb[0].mxu0 %v756
      %v987 = vpop.f32.mrb[0].mxu0
      %v988 = vadd.f32 0.0, %v987
      %v989 = vpop.f32.mrb[0].mxu0
      %990 = vmatprep.mubr.f32.mxu0 0.0
      %991 = vmatmul.mubr.f32.gmra.mrb[0].mxu0 %v757
      %v992 = vpop.f32.mrb[0].mxu0
      %v993 = vadd.f32 0.0, %v992
      %v994 = vpop.f32.mrb[0].mxu0
      %995 = vmatprep.mubr.f32.mxu0 0.0
      %996 = vmatmul.mubr.f32.gmra.mrb[0].mxu0 %v758
      %v997 = vpop.f32.mrb[0].mxu0
      %v998 = vadd.f32 0.0, %v997
      %v999 = vpop.f32.mrb[0].mxu0
      %1000 = vmatprep.mubr.f32.mxu0 0.0
      %1001 = vmatmul.mubr.f32.gmra.mrb[0].mxu0 %v759
      %v1002 = vpop.f32.mrb[0].mxu0
      %v1003 = vadd.f32 0.0, %v1002
      %v1004 = vpop.f32.mrb[0].mxu0
      %1005 = vmatprep.mubr.f32.mxu0 0.0
      %1006 = vmatmul.mubr.f32.gmra.mrb[0].mxu0 %v760
      %v1007 = vpop.f32.mrb[0].mxu0
      %v1008 = vadd.f32 0.0, %v1007
      %v1009 = vpop.f32.mrb[0].mxu0
      %1010 = vmatprep.mubr.f32.mxu0 0.0
      %1011 = vmatmul.mubr.f32.gmra.mrb[0].mxu0 %v761
      %v1012 = vpop.f32.mrb[0].mxu0
      %v1013 = vadd.f32 0.0, %v1012
      %v1014 = vpop.f32.mrb[0].mxu0
      %1015 = vmatprep.mubr.f32.mxu0 0.0
      %1016 = vmatmul.mubr.f32.gmra.mrb[0].mxu0 %v762
      %v1017 = vpop.f32.mrb[0].mxu0
      %v1018 = vadd.f32 0.0, %v1017
      %v1019 = vpop.f32.mrb[0].mxu0
      %1020 = vdwg.mxu0
      %v1021 = vadd.f32 %v844, %v943
      %v1022 = vadd.f32 %v845, %v948
      %v1023 = vadd.f32 %v846, %v953
      %v1024 = vadd.f32 %v847, %v958
      %v1025 = vadd.f32 %v848, %v963
      %v1026 = vadd.f32 %v849, %v968
      %v1027 = vadd.f32 %v850, %v973
      %v1028 = vadd.f32 %v851, %v978
      %v1029 = vadd.f32 %v852, %v983
      %v1030 = vadd.f32 %v853, %v988
      %v1031 = vadd.f32 %v854, %v993
      %v1032 = vadd.f32 %v855, %v998
      %v1033 = vadd.f32 %v856, %v1003
      %v1034 = vadd.f32 %v857, %v1008
      %v1035 = vadd.f32 %v858, %v1013
      %v1036 = vadd.f32 %v859, %v1018
      %1037 = vst [vmem:[#allocation2] sm:$0xff] %v1021
      %1038 = vst [vmem:[#allocation2 + $0x8] sm:$0xff] %v1022
      %1039 = vst [vmem:[#allocation2 + $0x10] sm:$0xff] %v1023
      %1040 = vst [vmem:[#allocation2 + $0x18] sm:$0xff] %v1024
      %1041 = vst [vmem:[#allocation2 + $0x20] sm:$0xff] %v1025
      %1042 = vst [vmem:[#allocation2 + $0x28] sm:$0xff] %v1026
      %1043 = vst [vmem:[#allocation2 + $0x30] sm:$0xff] %v1027
      %1044 = vst [vmem:[#allocation2 + $0x38] sm:$0xff] %v1028
      %1045 = vst [vmem:[#allocation2 + $0x40] sm:$0xff] %v1029
      %1046 = vst [vmem:[#allocation2 + $0x48] sm:$0xff] %v1030
      %1047 = vst [vmem:[#allocation2 + $0x50] sm:$0xff] %v1031
      %1048 = vst [vmem:[#allocation2 + $0x58] sm:$0xff] %v1032
      %1049 = vst [vmem:[#allocation2 + $0x60] sm:$0xff] %v1033
      %1050 = vst [vmem:[#allocation2 + $0x68] sm:$0xff] %v1034
      %1051 = vst [vmem:[#allocation2 + $0x70] sm:$0xff] %v1035
      %1052 = vst [vmem:[#allocation2 + $0x78] sm:$0xff] %v1036
    $region89: #{tpu_custom_call.1} parent=1 // pred_fallthru
      _
    // Predicated region
    $region90: #{tpu_custom_call.1} parent=1 // pred_check
      %p1053 = pneg %p145
    $region91: #{tpu_custom_call.1} parent=1 // pred_check_branch
      %1055 = sbr.rel (%p1053) target = $region93
    $region92: #{tpu_custom_call.1} parent=1 // pred_region
      %v1056 = vld [vmem:[#allocation2] sm:$0xff]
      %v1057 = vld [vmem:[#allocation2 + $0x8] sm:$0xff]
      %v1058 = vld [vmem:[#allocation2 + $0x10] sm:$0xff]
      %v1059 = vld [vmem:[#allocation2 + $0x18] sm:$0xff]
      %v1060 = vld [vmem:[#allocation2 + $0x20] sm:$0xff]
      %v1061 = vld [vmem:[#allocation2 + $0x28] sm:$0xff]
      %v1062 = vld [vmem:[#allocation2 + $0x30] sm:$0xff]
      %v1063 = vld [vmem:[#allocation2 + $0x38] sm:$0xff]
      %v1064 = vld [vmem:[#allocation2 + $0x40] sm:$0xff]
      %v1065 = vld [vmem:[#allocation2 + $0x48] sm:$0xff]
      %v1066 = vld [vmem:[#allocation2 + $0x50] sm:$0xff]
      %v1067 = vld [vmem:[#allocation2 + $0x58] sm:$0xff]
      %v1068 = vld [vmem:[#allocation2 + $0x60] sm:$0xff]
      %v1069 = vld [vmem:[#allocation2 + $0x68] sm:$0xff]
      %v1070 = vld [vmem:[#allocation2 + $0x70] sm:$0xff]
      %v1071 = vld [vmem:[#allocation2 + $0x78] sm:$0xff]
      %v1072 = vld [vmem:[#allocation9] sm:$0xff]
      %v1073 = vld [vmem:[#allocation9 + $0x8] sm:$0xff]
      %v1074 = vld [vmem:[#allocation9 + $0x10] sm:$0xff]
      %v1075 = vld [vmem:[#allocation9 + $0x18] sm:$0xff]
      %v1076 = vld [vmem:[#allocation9 + $0x20] sm:$0xff]
      %v1077 = vld [vmem:[#allocation9 + $0x28] sm:$0xff]
      %v1078 = vld [vmem:[#allocation9 + $0x30] sm:$0xff]
      %v1079 = vld [vmem:[#allocation9 + $0x38] sm:$0xff]
      %v1080 = vld [vmem:[#allocation9 + $0x40] sm:$0xff]
      %v1081 = vld [vmem:[#allocation9 + $0x48] sm:$0xff]
      %v1082 = vld [vmem:[#allocation9 + $0x50] sm:$0xff]
      %v1083 = vld [vmem:[#allocation9 + $0x58] sm:$0xff]
      %v1084 = vld [vmem:[#allocation9 + $0x60] sm:$0xff]
      %v1085 = vld [vmem:[#allocation9 + $0x68] sm:$0xff]
      %v1086 = vld [vmem:[#allocation9 + $0x70] sm:$0xff]
      %v1087 = vld [vmem:[#allocation9 + $0x78] sm:$0xff]
      %v1088 = vadd.f32 %v1056, %v1072
      %v1089 = vadd.f32 %v1057, %v1073
      %v1090 = vadd.f32 %v1058, %v1074
      %v1091 = vadd.f32 %v1059, %v1075
      %v1092 = vadd.f32 %v1060, %v1076
      %v1093 = vadd.f32 %v1061, %v1077
      %v1094 = vadd.f32 %v1062, %v1078
      %v1095 = vadd.f32 %v1063, %v1079
      %v1096 = vadd.f32 %v1064, %v1080
      %v1097 = vadd.f32 %v1065, %v1081
      %v1098 = vadd.f32 %v1066, %v1082
      %v1099 = vadd.f32 %v1067, %v1083
      %v1100 = vadd.f32 %v1068, %v1084
      %v1101 = vadd.f32 %v1069, %v1085
      %v1102 = vadd.f32 %v1070, %v1086
      %v1103 = vadd.f32 %v1071, %v1087
      %v1104 = vld [vmem:[#allocation3] sm:$0xff]
      %v1105 = vld [vmem:[#allocation3 + $0x8] sm:$0xff]
      %v1106 = vld [vmem:[#allocation3 + $0x10] sm:$0xff]
      %v1107 = vld [vmem:[#allocation3 + $0x18] sm:$0xff]
      %v1108 = vld [vmem:[#allocation3 + $0x20] sm:$0xff]
      %v1109 = vld [vmem:[#allocation3 + $0x28] sm:$0xff]
      %v1110 = vld [vmem:[#allocation3 + $0x30] sm:$0xff]
      %v1111 = vld [vmem:[#allocation3 + $0x38] sm:$0xff]
      %v1112 = vld [vmem:[#allocation3 + $0x40] sm:$0xff]
      %v1113 = vld [vmem:[#allocation3 + $0x48] sm:$0xff]
      %v1114 = vld [vmem:[#allocation3 + $0x50] sm:$0xff]
      %v1115 = vld [vmem:[#allocation3 + $0x58] sm:$0xff]
      %v1116 = vld [vmem:[#allocation3 + $0x60] sm:$0xff]
      %v1117 = vld [vmem:[#allocation3 + $0x68] sm:$0xff]
      %v1118 = vld [vmem:[#allocation3 + $0x70] sm:$0xff]
      %v1119 = vld [vmem:[#allocation3 + $0x78] sm:$0xff]
      %v1120 = vadd.f32 %v1104, 1.0
      %v1121 = vadd.f32 %v1105, 1.0
      %v1122 = vadd.f32 %v1106, 1.0
      %v1123 = vadd.f32 %v1107, 1.0
      %v1124 = vadd.f32 %v1108, 1.0
      %v1125 = vadd.f32 %v1109, 1.0
      %v1126 = vadd.f32 %v1110, 1.0
      %v1127 = vadd.f32 %v1111, 1.0
      %v1128 = vadd.f32 %v1112, 1.0
      %v1129 = vadd.f32 %v1113, 1.0
      %v1130 = vadd.f32 %v1114, 1.0
      %v1131 = vadd.f32 %v1115, 1.0
      %v1132 = vadd.f32 %v1116, 1.0
      %v1133 = vadd.f32 %v1117, 1.0
      %v1134 = vadd.f32 %v1118, 1.0
      %v1135 = vadd.f32 %v1119, 1.0
      %1137 = vset.pattern.permute.xlu0 0
      %1138 = vperm.xlu0 %1137, %v1120
      %v1139 = vpop.permute.xlu0 %1138
      %1142 = vset.pattern.permute.xlu0 0
      %1143 = vperm.xlu0 %1142, %v1121
      %v1144 = vpop.permute.xlu0 %1143
      %1147 = vset.pattern.permute.xlu0 0
      %1148 = vperm.xlu0 %1147, %v1122
      %v1149 = vpop.permute.xlu0 %1148
      %1152 = vset.pattern.permute.xlu0 0
      %1153 = vperm.xlu0 %1152, %v1123
      %v1154 = vpop.permute.xlu0 %1153
      %1157 = vset.pattern.permute.xlu0 0
      %1158 = vperm.xlu0 %1157, %v1124
      %v1159 = vpop.permute.xlu0 %1158
      %1162 = vset.pattern.permute.xlu0 0
      %1163 = vperm.xlu0 %1162, %v1125
      %v1164 = vpop.permute.xlu0 %1163
      %1167 = vset.pattern.permute.xlu0 0
      %1168 = vperm.xlu0 %1167, %v1126
      %v1169 = vpop.permute.xlu0 %1168
      %1172 = vset.pattern.permute.xlu0 0
      %1173 = vperm.xlu0 %1172, %v1127
      %v1174 = vpop.permute.xlu0 %1173
      %1177 = vset.pattern.permute.xlu0 0
      %1178 = vperm.xlu0 %1177, %v1128
      %v1179 = vpop.permute.xlu0 %1178
      %1182 = vset.pattern.permute.xlu0 0
      %1183 = vperm.xlu0 %1182, %v1129
      %v1184 = vpop.permute.xlu0 %1183
      %1187 = vset.pattern.permute.xlu0 0
      %1188 = vperm.xlu0 %1187, %v1130
      %v1189 = vpop.permute.xlu0 %1188
      %1192 = vset.pattern.permute.xlu0 0
      %1193 = vperm.xlu0 %1192, %v1131
      %v1194 = vpop.permute.xlu0 %1193
      %1197 = vset.pattern.permute.xlu0 0
      %1198 = vperm.xlu0 %1197, %v1132
      %v1199 = vpop.permute.xlu0 %1198
      %1202 = vset.pattern.permute.xlu0 0
      %1203 = vperm.xlu0 %1202, %v1133
      %v1204 = vpop.permute.xlu0 %1203
      %1207 = vset.pattern.permute.xlu0 0
      %1208 = vperm.xlu0 %1207, %v1134
      %v1209 = vpop.permute.xlu0 %1208
      %1212 = vset.pattern.permute.xlu0 0
      %1213 = vperm.xlu0 %1212, %v1135
      %v1214 = vpop.permute.xlu0 %1213
      %v1216 = vrcp.pop %v1139
      %v1217 = vmul.f32 %v1088, %v1216
      %v1218 = vrcp.pop %v1144
      %v1219 = vmul.f32 %v1089, %v1218
      %v1220 = vrcp.pop %v1149
      %v1221 = vmul.f32 %v1090, %v1220
      %v1222 = vrcp.pop %v1154
      %v1223 = vmul.f32 %v1091, %v1222
      %v1224 = vrcp.pop %v1159
      %v1225 = vmul.f32 %v1092, %v1224
      %v1226 = vrcp.pop %v1164
      %v1227 = vmul.f32 %v1093, %v1226
      %v1228 = vrcp.pop %v1169
      %v1229 = vmul.f32 %v1094, %v1228
      %v1230 = vrcp.pop %v1174
      %v1231 = vmul.f32 %v1095, %v1230
      %v1232 = vrcp.pop %v1179
      %v1233 = vmul.f32 %v1096, %v1232
      %v1234 = vrcp.pop %v1184
      %v1235 = vmul.f32 %v1097, %v1234
      %v1236 = vrcp.pop %v1189
      %v1237 = vmul.f32 %v1098, %v1236
      %v1238 = vrcp.pop %v1194
      %v1239 = vmul.f32 %v1099, %v1238
      %v1240 = vrcp.pop %v1199
      %v1241 = vmul.f32 %v1100, %v1240
      %v1242 = vrcp.pop %v1204
      %v1243 = vmul.f32 %v1101, %v1242
      %v1244 = vrcp.pop %v1209
      %v1245 = vmul.f32 %v1102, %v1244
      %v1246 = vrcp.pop %v1214
      %v1247 = vmul.f32 %v1103, %v1246
      %v1248 = vld [vmem:[#allocation10] sm:$0xff]
      %v1249 = vld [vmem:[#allocation10 + $0x8] sm:$0xff]
      %v1250 = vld [vmem:[#allocation10 + $0x10] sm:$0xff]
      %v1251 = vld [vmem:[#allocation10 + $0x18] sm:$0xff]
      %v1252 = vld [vmem:[#allocation10 + $0x20] sm:$0xff]
      %v1253 = vld [vmem:[#allocation10 + $0x28] sm:$0xff]
      %v1254 = vld [vmem:[#allocation10 + $0x30] sm:$0xff]
      %v1255 = vld [vmem:[#allocation10 + $0x38] sm:$0xff]
      %v1256 = vld [vmem:[#allocation10 + $0x40] sm:$0xff]
      %v1257 = vld [vmem:[#allocation10 + $0x48] sm:$0xff]
      %v1258 = vld [vmem:[#allocation10 + $0x50] sm:$0xff]
      %v1259 = vld [vmem:[#allocation10 + $0x58] sm:$0xff]
      %v1260 = vld [vmem:[#allocation10 + $0x60] sm:$0xff]
      %v1261 = vld [vmem:[#allocation10 + $0x68] sm:$0xff]
      %v1262 = vld [vmem:[#allocation10 + $0x70] sm:$0xff]
      %v1263 = vld [vmem:[#allocation10 + $0x78] sm:$0xff]
      %v1264 = vld [vmem:[%s7] sm:$0x1]
      %v1266 = vlaneseq
      %v1267 = vshrl.u32 %v1266, 7
      %v1268 = vsub.s32 0, %v1267
      %v1269 = vrot.slane %v1264, %v1268
      %1271 = vmatprep.subr.mxu0 0.0
      %1272 = vmatpush1.msra.mxu0 %v1248
      %1273 = vmatprep.subr.mxu0 0.0
      %1274 = vmatpush1.msra.mxu0 %v1249
      %1275 = vmatprep.subr.mxu0 0.0
      %1276 = vmatpush1.msra.mxu0 %v1250
      %1277 = vmatprep.subr.mxu0 0.0
      %1278 = vmatpush1.msra.mxu0 %v1251
      %1279 = vmatprep.subr.mxu0 0.0
      %1280 = vmatpush1.msra.mxu0 %v1252
      %1281 = vmatprep.subr.mxu0 0.0
      %1282 = vmatpush1.msra.mxu0 %v1253
      %1283 = vmatprep.subr.mxu0 0.0
      %1284 = vmatpush1.msra.mxu0 %v1254
      %1285 = vmatprep.subr.mxu0 0.0
      %1286 = vmatpush1.msra.mxu0 %v1255
      %1287 = vmatprep.subr.mxu0 0.0
      %1288 = vmatpush1.msra.mxu0 %v1256
      %1289 = vmatprep.subr.mxu0 0.0
      %1290 = vmatpush1.msra.mxu0 %v1257
      %1291 = vmatprep.subr.mxu0 0.0
      %1292 = vmatpush1.msra.mxu0 %v1258
      %1293 = vmatprep.subr.mxu0 0.0
      %1294 = vmatpush1.msra.mxu0 %v1259
      %1295 = vmatprep.subr.mxu0 0.0
      %1296 = vmatpush1.msra.mxu0 %v1260
      %1297 = vmatprep.subr.mxu0 0.0
      %1298 = vmatpush1.msra.mxu0 %v1261
      %1299 = vmatprep.subr.mxu0 0.0
      %1300 = vmatpush1.msra.mxu0 %v1262
      %1301 = vmatprep.subr.mxu0 0.0
      %1302 = vmatpush1.msra.mxu0 %v1263
      %1303 = vmatprep.subr.mxu0 0.0
      %1304 = vmatpush1.msra.mxu0 0.0
      %1305 = vmatprep.subr.mxu0 0.0
      %1306 = vmatpush1.msra.mxu0 0.0
      %1307 = vmatprep.subr.mxu0 0.0
      %1308 = vmatpush1.msra.mxu0 0.0
      %1309 = vmatprep.subr.mxu0 0.0
      %1310 = vmatpush1.msra.mxu0 0.0
      %1311 = vmatprep.subr.mxu0 0.0
      %1312 = vmatpush1.msra.mxu0 0.0
      %1313 = vmatprep.subr.mxu0 0.0
      %1314 = vmatpush1.msra.mxu0 0.0
      %1315 = vmatprep.subr.mxu0 0.0
      %1316 = vmatpush1.msra.mxu0 0.0
      %1317 = vmatprep.subr.mxu0 0.0
      %1318 = vmatpush1.msra.mxu0 0.0
      %1319 = vmatprep.subr.mxu0 0.0
      %1320 = vmatpush1.msra.mxu0 0.0
      %1321 = vmatprep.subr.mxu0 0.0
      %1322 = vmatpush1.msra.mxu0 0.0
      %1323 = vmatprep.subr.mxu0 0.0
      %1324 = vmatpush1.msra.mxu0 0.0
      %1325 = vmatprep.subr.mxu0 0.0
      %1326 = vmatpush1.msra.mxu0 0.0
      %1327 = vmatprep.subr.mxu0 0.0
      %1328 = vmatpush1.msra.mxu0 0.0
      %1329 = vmatprep.subr.mxu0 0.0
      %1330 = vmatpush1.msra.mxu0 0.0
      %1331 = vmatprep.subr.mxu0 0.0
      %1332 = vmatpush1.msra.mxu0 0.0
      %1333 = vmatprep.subr.mxu0 0.0
      %1334 = vmatpush1.msra.mxu0 0.0
      %1335 = vmatprep.mubr.f32.mxu0 0.0
      %1336 = vmatmul.mubr.f32.gmra.mrb[0].mxu0 %v1217
      %v1337 = vpop.f32.mrb[0].mxu0
      %v1338 = vadd.f32 %v1269, %v1337
      %v1339 = vpop.f32.mrb[0].mxu0
      %1340 = vmatprep.mubr.f32.mxu0 0.0
      %1341 = vmatmul.mubr.f32.gmra.mrb[0].mxu0 %v1219
      %v1342 = vpop.f32.mrb[0].mxu0
      %v1343 = vadd.f32 %v1269, %v1342
      %v1344 = vpop.f32.mrb[0].mxu0
      %1345 = vmatprep.mubr.f32.mxu0 0.0
      %1346 = vmatmul.mubr.f32.gmra.mrb[0].mxu0 %v1221
      %v1347 = vpop.f32.mrb[0].mxu0
      %v1348 = vadd.f32 %v1269, %v1347
      %v1349 = vpop.f32.mrb[0].mxu0
      %1350 = vmatprep.mubr.f32.mxu0 0.0
      %1351 = vmatmul.mubr.f32.gmra.mrb[0].mxu0 %v1223
      %v1352 = vpop.f32.mrb[0].mxu0
      %v1353 = vadd.f32 %v1269, %v1352
      %v1354 = vpop.f32.mrb[0].mxu0
      %1355 = vmatprep.mubr.f32.mxu0 0.0
      %1356 = vmatmul.mubr.f32.gmra.mrb[0].mxu0 %v1225
      %v1357 = vpop.f32.mrb[0].mxu0
      %v1358 = vadd.f32 %v1269, %v1357
      %v1359 = vpop.f32.mrb[0].mxu0
      %1360 = vmatprep.mubr.f32.mxu0 0.0
      %1361 = vmatmul.mubr.f32.gmra.mrb[0].mxu0 %v1227
      %v1362 = vpop.f32.mrb[0].mxu0
      %v1363 = vadd.f32 %v1269, %v1362
      %v1364 = vpop.f32.mrb[0].mxu0
      %1365 = vmatprep.mubr.f32.mxu0 0.0
      %1366 = vmatmul.mubr.f32.gmra.mrb[0].mxu0 %v1229
      %v1367 = vpop.f32.mrb[0].mxu0
      %v1368 = vadd.f32 %v1269, %v1367
      %v1369 = vpop.f32.mrb[0].mxu0
      %1370 = vmatprep.mubr.f32.mxu0 0.0
      %1371 = vmatmul.mubr.f32.gmra.mrb[0].mxu0 %v1231
      %v1372 = vpop.f32.mrb[0].mxu0
      %v1373 = vadd.f32 %v1269, %v1372
      %v1374 = vpop.f32.mrb[0].mxu0
      %1375 = vmatprep.mubr.f32.mxu0 0.0
      %1376 = vmatmul.mubr.f32.gmra.mrb[0].mxu0 %v1233
      %v1377 = vpop.f32.mrb[0].mxu0
      %v1378 = vadd.f32 %v1269, %v1377
      %v1379 = vpop.f32.mrb[0].mxu0
      %1380 = vmatprep.mubr.f32.mxu0 0.0
      %1381 = vmatmul.mubr.f32.gmra.mrb[0].mxu0 %v1235
      %v1382 = vpop.f32.mrb[0].mxu0
      %v1383 = vadd.f32 %v1269, %v1382
      %v1384 = vpop.f32.mrb[0].mxu0
      %1385 = vmatprep.mubr.f32.mxu0 0.0
      %1386 = vmatmul.mubr.f32.gmra.mrb[0].mxu0 %v1237
      %v1387 = vpop.f32.mrb[0].mxu0
      %v1388 = vadd.f32 %v1269, %v1387
      %v1389 = vpop.f32.mrb[0].mxu0
      %1390 = vmatprep.mubr.f32.mxu0 0.0
      %1391 = vmatmul.mubr.f32.gmra.mrb[0].mxu0 %v1239
      %v1392 = vpop.f32.mrb[0].mxu0
      %v1393 = vadd.f32 %v1269, %v1392
      %v1394 = vpop.f32.mrb[0].mxu0
      %1395 = vmatprep.mubr.f32.mxu0 0.0
      %1396 = vmatmul.mubr.f32.gmra.mrb[0].mxu0 %v1241
      %v1397 = vpop.f32.mrb[0].mxu0
      %v1398 = vadd.f32 %v1269, %v1397
      %v1399 = vpop.f32.mrb[0].mxu0
      %1400 = vmatprep.mubr.f32.mxu0 0.0
      %1401 = vmatmul.mubr.f32.gmra.mrb[0].mxu0 %v1243
      %v1402 = vpop.f32.mrb[0].mxu0
      %v1403 = vadd.f32 %v1269, %v1402
      %v1404 = vpop.f32.mrb[0].mxu0
      %1405 = vmatprep.mubr.f32.mxu0 0.0
      %1406 = vmatmul.mubr.f32.gmra.mrb[0].mxu0 %v1245
      %v1407 = vpop.f32.mrb[0].mxu0
      %v1408 = vadd.f32 %v1269, %v1407
      %v1409 = vpop.f32.mrb[0].mxu0
      %1410 = vmatprep.mubr.f32.mxu0 0.0
      %1411 = vmatmul.mubr.f32.gmra.mrb[0].mxu0 %v1247
      %v1412 = vpop.f32.mrb[0].mxu0
      %v1413 = vadd.f32 %v1269, %v1412
      %v1414 = vpop.f32.mrb[0].mxu0
      %1415 = vdwg.mxu0
      %v1416 = vld [vmem:[#allocation12] sm:$0xff]
      %v1417 = vld [vmem:[#allocation12 + $0x8] sm:$0xff]
      %v1418 = vld [vmem:[#allocation12 + $0x10] sm:$0xff]
      %v1419 = vld [vmem:[#allocation12 + $0x18] sm:$0xff]
      %v1420 = vld [vmem:[#allocation12 + $0x20] sm:$0xff]
      %v1421 = vld [vmem:[#allocation12 + $0x28] sm:$0xff]
      %v1422 = vld [vmem:[#allocation12 + $0x30] sm:$0xff]
      %v1423 = vld [vmem:[#allocation12 + $0x38] sm:$0xff]
      %v1424 = vld [vmem:[#allocation12 + $0x40] sm:$0xff]
      %v1425 = vld [vmem:[#allocation12 + $0x48] sm:$0xff]
      %v1426 = vld [vmem:[#allocation12 + $0x50] sm:$0xff]
      %v1427 = vld [vmem:[#allocation12 + $0x58] sm:$0xff]
      %v1428 = vld [vmem:[#allocation12 + $0x60] sm:$0xff]
      %v1429 = vld [vmem:[#allocation12 + $0x68] sm:$0xff]
      %v1430 = vld [vmem:[#allocation12 + $0x70] sm:$0xff]
      %v1431 = vld [vmem:[#allocation12 + $0x78] sm:$0xff]
      %v1432 = vld [vmem:[#allocation13] sm:$0xff]
      %v1433 = vld [vmem:[#allocation13 + $0x8] sm:$0xff]
      %v1434 = vld [vmem:[#allocation13 + $0x10] sm:$0xff]
      %v1435 = vld [vmem:[#allocation13 + $0x18] sm:$0xff]
      %v1436 = vld [vmem:[#allocation13 + $0x20] sm:$0xff]
      %v1437 = vld [vmem:[#allocation13 + $0x28] sm:$0xff]
      %v1438 = vld [vmem:[#allocation13 + $0x30] sm:$0xff]
      %v1439 = vld [vmem:[#allocation13 + $0x38] sm:$0xff]
      %v1440 = vld [vmem:[#allocation13 + $0x40] sm:$0xff]
      %v1441 = vld [vmem:[#allocation13 + $0x48] sm:$0xff]
      %v1442 = vld [vmem:[#allocation13 + $0x50] sm:$0xff]
      %v1443 = vld [vmem:[#allocation13 + $0x58] sm:$0xff]
      %v1444 = vld [vmem:[#allocation13 + $0x60] sm:$0xff]
      %v1445 = vld [vmem:[#allocation13 + $0x68] sm:$0xff]
      %v1446 = vld [vmem:[#allocation13 + $0x70] sm:$0xff]
      %v1447 = vld [vmem:[#allocation13 + $0x78] sm:$0xff]
      %1448 = vmatprep.subr.mxu0 0.0
      %1449 = vmatpush1.msra.mxu0 %v1432
      %1450 = vmatprep.subr.mxu0 0.0
      %1451 = vmatpush1.msra.mxu0 %v1433
      %1452 = vmatprep.subr.mxu0 0.0
      %1453 = vmatpush1.msra.mxu0 %v1434
      %1454 = vmatprep.subr.mxu0 0.0
      %1455 = vmatpush1.msra.mxu0 %v1435
      %1456 = vmatprep.subr.mxu0 0.0
      %1457 = vmatpush1.msra.mxu0 %v1436
      %1458 = vmatprep.subr.mxu0 0.0
      %1459 = vmatpush1.msra.mxu0 %v1437
      %1460 = vmatprep.subr.mxu0 0.0
      %1461 = vmatpush1.msra.mxu0 %v1438
      %1462 = vmatprep.subr.mxu0 0.0
      %1463 = vmatpush1.msra.mxu0 %v1439
      %1464 = vmatprep.subr.mxu0 0.0
      %1465 = vmatpush1.msra.mxu0 %v1440
      %1466 = vmatprep.subr.mxu0 0.0
      %1467 = vmatpush1.msra.mxu0 %v1441
      %1468 = vmatprep.subr.mxu0 0.0
      %1469 = vmatpush1.msra.mxu0 %v1442
      %1470 = vmatprep.subr.mxu0 0.0
      %1471 = vmatpush1.msra.mxu0 %v1443
      %1472 = vmatprep.subr.mxu0 0.0
      %1473 = vmatpush1.msra.mxu0 %v1444
      %1474 = vmatprep.subr.mxu0 0.0
      %1475 = vmatpush1.msra.mxu0 %v1445
      %1476 = vmatprep.subr.mxu0 0.0
      %1477 = vmatpush1.msra.mxu0 %v1446
      %1478 = vmatprep.subr.mxu0 0.0
      %1479 = vmatpush1.msra.mxu0 %v1447
      %1480 = vmatprep.subr.mxu0 0.0
      %1481 = vmatpush1.msra.mxu0 0.0
      %1482 = vmatprep.subr.mxu0 0.0
      %1483 = vmatpush1.msra.mxu0 0.0
      %1484 = vmatprep.subr.mxu0 0.0
      %1485 = vmatpush1.msra.mxu0 0.0
      %1486 = vmatprep.subr.mxu0 0.0
      %1487 = vmatpush1.msra.mxu0 0.0
      %1488 = vmatprep.subr.mxu0 0.0
      %1489 = vmatpush1.msra.mxu0 0.0
      %1490 = vmatprep.subr.mxu0 0.0
      %1491 = vmatpush1.msra.mxu0 0.0
      %1492 = vmatprep.subr.mxu0 0.0
      %1493 = vmatpush1.msra.mxu0 0.0
      %1494 = vmatprep.subr.mxu0 0.0
      %1495 = vmatpush1.msra.mxu0 0.0
      %1496 = vmatprep.subr.mxu0 0.0
      %1497 = vmatpush1.msra.mxu0 0.0
      %1498 = vmatprep.subr.mxu0 0.0
      %1499 = vmatpush1.msra.mxu0 0.0
      %1500 = vmatprep.subr.mxu0 0.0
      %1501 = vmatpush1.msra.mxu0 0.0
      %1502 = vmatprep.subr.mxu0 0.0
      %1503 = vmatpush1.msra.mxu0 0.0
      %1504 = vmatprep.subr.mxu0 0.0
      %1505 = vmatpush1.msra.mxu0 0.0
      %1506 = vmatprep.subr.mxu0 0.0
      %1507 = vmatpush1.msra.mxu0 0.0
      %1508 = vmatprep.subr.mxu0 0.0
      %1509 = vmatpush1.msra.mxu0 0.0
      %1510 = vmatprep.subr.mxu0 0.0
      %1511 = vmatpush1.msra.mxu0 0.0
      %1512 = vmatprep.mubr.f32.mxu0 0.0
      %1513 = vmatmul.mubr.f32.gmra.mrb[0].mxu0 %v1338
      %v1514 = vpop.f32.mrb[0].mxu0
      %v1515 = vadd.f32 0.0, %v1514
      %v1516 = vpop.f32.mrb[0].mxu0
      %1517 = vmatprep.mubr.f32.mxu0 0.0
      %1518 = vmatmul.mubr.f32.gmra.mrb[0].mxu0 %v1343
      %v1519 = vpop.f32.mrb[0].mxu0
      %v1520 = vadd.f32 0.0, %v1519
      %v1521 = vpop.f32.mrb[0].mxu0
      %1522 = vmatprep.mubr.f32.mxu0 0.0
      %1523 = vmatmul.mubr.f32.gmra.mrb[0].mxu0 %v1348
      %v1524 = vpop.f32.mrb[0].mxu0
      %v1525 = vadd.f32 0.0, %v1524
      %v1526 = vpop.f32.mrb[0].mxu0
      %1527 = vmatprep.mubr.f32.mxu0 0.0
      %1528 = vmatmul.mubr.f32.gmra.mrb[0].mxu0 %v1353
      %v1529 = vpop.f32.mrb[0].mxu0
      %v1530 = vadd.f32 0.0, %v1529
      %v1531 = vpop.f32.mrb[0].mxu0
      %1532 = vmatprep.mubr.f32.mxu0 0.0
      %1533 = vmatmul.mubr.f32.gmra.mrb[0].mxu0 %v1358
      %v1534 = vpop.f32.mrb[0].mxu0
      %v1535 = vadd.f32 0.0, %v1534
      %v1536 = vpop.f32.mrb[0].mxu0
      %1537 = vmatprep.mubr.f32.mxu0 0.0
      %1538 = vmatmul.mubr.f32.gmra.mrb[0].mxu0 %v1363
      %v1539 = vpop.f32.mrb[0].mxu0
      %v1540 = vadd.f32 0.0, %v1539
      %v1541 = vpop.f32.mrb[0].mxu0
      %1542 = vmatprep.mubr.f32.mxu0 0.0
      %1543 = vmatmul.mubr.f32.gmra.mrb[0].mxu0 %v1368
      %v1544 = vpop.f32.mrb[0].mxu0
      %v1545 = vadd.f32 0.0, %v1544
      %v1546 = vpop.f32.mrb[0].mxu0
      %1547 = vmatprep.mubr.f32.mxu0 0.0
      %1548 = vmatmul.mubr.f32.gmra.mrb[0].mxu0 %v1373
      %v1549 = vpop.f32.mrb[0].mxu0
      %v1550 = vadd.f32 0.0, %v1549
      %v1551 = vpop.f32.mrb[0].mxu0
      %1552 = vmatprep.mubr.f32.mxu0 0.0
      %1553 = vmatmul.mubr.f32.gmra.mrb[0].mxu0 %v1378
      %v1554 = vpop.f32.mrb[0].mxu0
      %v1555 = vadd.f32 0.0, %v1554
      %v1556 = vpop.f32.mrb[0].mxu0
      %1557 = vmatprep.mubr.f32.mxu0 0.0
      %1558 = vmatmul.mubr.f32.gmra.mrb[0].mxu0 %v1383
      %v1559 = vpop.f32.mrb[0].mxu0
      %v1560 = vadd.f32 0.0, %v1559
      %v1561 = vpop.f32.mrb[0].mxu0
      %1562 = vmatprep.mubr.f32.mxu0 0.0
      %1563 = vmatmul.mubr.f32.gmra.mrb[0].mxu0 %v1388
      %v1564 = vpop.f32.mrb[0].mxu0
      %v1565 = vadd.f32 0.0, %v1564
      %v1566 = vpop.f32.mrb[0].mxu0
      %1567 = vmatprep.mubr.f32.mxu0 0.0
      %1568 = vmatmul.mubr.f32.gmra.mrb[0].mxu0 %v1393
      %v1569 = vpop.f32.mrb[0].mxu0
      %v1570 = vadd.f32 0.0, %v1569
      %v1571 = vpop.f32.mrb[0].mxu0
      %1572 = vmatprep.mubr.f32.mxu0 0.0
      %1573 = vmatmul.mubr.f32.gmra.mrb[0].mxu0 %v1398
      %v1574 = vpop.f32.mrb[0].mxu0
      %v1575 = vadd.f32 0.0, %v1574
      %v1576 = vpop.f32.mrb[0].mxu0
      %1577 = vmatprep.mubr.f32.mxu0 0.0
      %1578 = vmatmul.mubr.f32.gmra.mrb[0].mxu0 %v1403
      %v1579 = vpop.f32.mrb[0].mxu0
      %v1580 = vadd.f32 0.0, %v1579
      %v1581 = vpop.f32.mrb[0].mxu0
      %1582 = vmatprep.mubr.f32.mxu0 0.0
      %1583 = vmatmul.mubr.f32.gmra.mrb[0].mxu0 %v1408
      %v1584 = vpop.f32.mrb[0].mxu0
      %v1585 = vadd.f32 0.0, %v1584
      %v1586 = vpop.f32.mrb[0].mxu0
      %1587 = vmatprep.mubr.f32.mxu0 0.0
      %1588 = vmatmul.mubr.f32.gmra.mrb[0].mxu0 %v1413
      %v1589 = vpop.f32.mrb[0].mxu0
      %v1590 = vadd.f32 0.0, %v1589
      %v1591 = vpop.f32.mrb[0].mxu0
      %1592 = vdwg.mxu0
      %1593 = vmatprep.subr.mxu0 0.0
      %1594 = vmatpush1.msra.mxu0 %v1416
      %1595 = vmatprep.subr.mxu0 0.0
      %1596 = vmatpush1.msra.mxu0 %v1417
      %1597 = vmatprep.subr.mxu0 0.0
      %1598 = vmatpush1.msra.mxu0 %v1418
      %1599 = vmatprep.subr.mxu0 0.0
      %1600 = vmatpush1.msra.mxu0 %v1419
      %1601 = vmatprep.subr.mxu0 0.0
      %1602 = vmatpush1.msra.mxu0 %v1420
      %1603 = vmatprep.subr.mxu0 0.0
      %1604 = vmatpush1.msra.mxu0 %v1421
      %1605 = vmatprep.subr.mxu0 0.0
      %1606 = vmatpush1.msra.mxu0 %v1422
      %1607 = vmatprep.subr.mxu0 0.0
      %1608 = vmatpush1.msra.mxu0 %v1423
      %1609 = vmatprep.subr.mxu0 0.0
      %1610 = vmatpush1.msra.mxu0 %v1424
      %1611 = vmatprep.subr.mxu0 0.0
      %1612 = vmatpush1.msra.mxu0 %v1425
      %1613 = vmatprep.subr.mxu0 0.0
      %1614 = vmatpush1.msra.mxu0 %v1426
      %1615 = vmatprep.subr.mxu0 0.0
      %1616 = vmatpush1.msra.mxu0 %v1427
      %1617 = vmatprep.subr.mxu0 0.0
      %1618 = vmatpush1.msra.mxu0 %v1428
      %1619 = vmatprep.subr.mxu0 0.0
      %1620 = vmatpush1.msra.mxu0 %v1429
      %1621 = vmatprep.subr.mxu0 0.0
      %1622 = vmatpush1.msra.mxu0 %v1430
      %1623 = vmatprep.subr.mxu0 0.0
      %1624 = vmatpush1.msra.mxu0 %v1431
      %1625 = vmatprep.subr.mxu0 0.0
      %1626 = vmatpush1.msra.mxu0 0.0
      %1627 = vmatprep.subr.mxu0 0.0
      %1628 = vmatpush1.msra.mxu0 0.0
      %1629 = vmatprep.subr.mxu0 0.0
      %1630 = vmatpush1.msra.mxu0 0.0
      %1631 = vmatprep.subr.mxu0 0.0
      %1632 = vmatpush1.msra.mxu0 0.0
      %1633 = vmatprep.subr.mxu0 0.0
      %1634 = vmatpush1.msra.mxu0 0.0
      %1635 = vmatprep.subr.mxu0 0.0
      %1636 = vmatpush1.msra.mxu0 0.0
      %1637 = vmatprep.subr.mxu0 0.0
      %1638 = vmatpush1.msra.mxu0 0.0
      %1639 = vmatprep.subr.mxu0 0.0
      %1640 = vmatpush1.msra.mxu0 0.0
      %1641 = vmatprep.subr.mxu0 0.0
      %1642 = vmatpush1.msra.mxu0 0.0
      %1643 = vmatprep.subr.mxu0 0.0
      %1644 = vmatpush1.msra.mxu0 0.0
      %1645 = vmatprep.subr.mxu0 0.0
      %1646 = vmatpush1.msra.mxu0 0.0
      %1647 = vmatprep.subr.mxu0 0.0
      %1648 = vmatpush1.msra.mxu0 0.0
      %1649 = vmatprep.subr.mxu0 0.0
      %1650 = vmatpush1.msra.mxu0 0.0
      %1651 = vmatprep.subr.mxu0 0.0
      %1652 = vmatpush1.msra.mxu0 0.0
      %1653 = vmatprep.subr.mxu0 0.0
      %1654 = vmatpush1.msra.mxu0 0.0
      %1655 = vmatprep.subr.mxu0 0.0
      %1656 = vmatpush1.msra.mxu0 0.0
      %1657 = vmatprep.mubr.f32.mxu0 0.0
      %1658 = vmatmul.mubr.f32.gmra.mrb[0].mxu0 %v1072
      %v1659 = vpop.f32.mrb[0].mxu0
      %v1660 = vadd.f32 %v1515, %v1659
      %v1661 = vpop.f32.mrb[0].mxu0
      %1662 = vmatprep.mubr.f32.mxu0 0.0
      %1663 = vmatmul.mubr.f32.gmra.mrb[0].mxu0 %v1073
      %v1664 = vpop.f32.mrb[0].mxu0
      %v1665 = vadd.f32 %v1520, %v1664
      %v1666 = vpop.f32.mrb[0].mxu0
      %1667 = vmatprep.mubr.f32.mxu0 0.0
      %1668 = vmatmul.mubr.f32.gmra.mrb[0].mxu0 %v1074
      %v1669 = vpop.f32.mrb[0].mxu0
      %v1670 = vadd.f32 %v1525, %v1669
      %v1671 = vpop.f32.mrb[0].mxu0
      %1672 = vmatprep.mubr.f32.mxu0 0.0
      %1673 = vmatmul.mubr.f32.gmra.mrb[0].mxu0 %v1075
      %v1674 = vpop.f32.mrb[0].mxu0
      %v1675 = vadd.f32 %v1530, %v1674
      %v1676 = vpop.f32.mrb[0].mxu0
      %1677 = vmatprep.mubr.f32.mxu0 0.0
      %1678 = vmatmul.mubr.f32.gmra.mrb[0].mxu0 %v1076
      %v1679 = vpop.f32.mrb[0].mxu0
      %v1680 = vadd.f32 %v1535, %v1679
      %v1681 = vpop.f32.mrb[0].mxu0
      %1682 = vmatprep.mubr.f32.mxu0 0.0
      %1683 = vmatmul.mubr.f32.gmra.mrb[0].mxu0 %v1077
      %v1684 = vpop.f32.mrb[0].mxu0
      %v1685 = vadd.f32 %v1540, %v1684
      %v1686 = vpop.f32.mrb[0].mxu0
      %1687 = vmatprep.mubr.f32.mxu0 0.0
      %1688 = vmatmul.mubr.f32.gmra.mrb[0].mxu0 %v1078
      %v1689 = vpop.f32.mrb[0].mxu0
      %v1690 = vadd.f32 %v1545, %v1689
      %v1691 = vpop.f32.mrb[0].mxu0
      %1692 = vmatprep.mubr.f32.mxu0 0.0
      %1693 = vmatmul.mubr.f32.gmra.mrb[0].mxu0 %v1079
      %v1694 = vpop.f32.mrb[0].mxu0
      %v1695 = vadd.f32 %v1550, %v1694
      %v1696 = vpop.f32.mrb[0].mxu0
      %1697 = vmatprep.mubr.f32.mxu0 0.0
      %1698 = vmatmul.mubr.f32.gmra.mrb[0].mxu0 %v1080
      %v1699 = vpop.f32.mrb[0].mxu0
      %v1700 = vadd.f32 %v1555, %v1699
      %v1701 = vpop.f32.mrb[0].mxu0
      %1702 = vmatprep.mubr.f32.mxu0 0.0
      %1703 = vmatmul.mubr.f32.gmra.mrb[0].mxu0 %v1081
      %v1704 = vpop.f32.mrb[0].mxu0
      %v1705 = vadd.f32 %v1560, %v1704
      %v1706 = vpop.f32.mrb[0].mxu0
      %1707 = vmatprep.mubr.f32.mxu0 0.0
      %1708 = vmatmul.mubr.f32.gmra.mrb[0].mxu0 %v1082
      %v1709 = vpop.f32.mrb[0].mxu0
      %v1710 = vadd.f32 %v1565, %v1709
      %v1711 = vpop.f32.mrb[0].mxu0
      %1712 = vmatprep.mubr.f32.mxu0 0.0
      %1713 = vmatmul.mubr.f32.gmra.mrb[0].mxu0 %v1083
      %v1714 = vpop.f32.mrb[0].mxu0
      %v1715 = vadd.f32 %v1570, %v1714
      %v1716 = vpop.f32.mrb[0].mxu0
      %1717 = vmatprep.mubr.f32.mxu0 0.0
      %1718 = vmatmul.mubr.f32.gmra.mrb[0].mxu0 %v1084
      %v1719 = vpop.f32.mrb[0].mxu0
      %v1720 = vadd.f32 %v1575, %v1719
      %v1721 = vpop.f32.mrb[0].mxu0
      %1722 = vmatprep.mubr.f32.mxu0 0.0
      %1723 = vmatmul.mubr.f32.gmra.mrb[0].mxu0 %v1085
      %v1724 = vpop.f32.mrb[0].mxu0
      %v1725 = vadd.f32 %v1580, %v1724
      %v1726 = vpop.f32.mrb[0].mxu0
      %1727 = vmatprep.mubr.f32.mxu0 0.0
      %1728 = vmatmul.mubr.f32.gmra.mrb[0].mxu0 %v1086
      %v1729 = vpop.f32.mrb[0].mxu0
      %v1730 = vadd.f32 %v1585, %v1729
      %v1731 = vpop.f32.mrb[0].mxu0
      %1732 = vmatprep.mubr.f32.mxu0 0.0
      %1733 = vmatmul.mubr.f32.gmra.mrb[0].mxu0 %v1087
      %v1734 = vpop.f32.mrb[0].mxu0
      %v1735 = vadd.f32 %v1590, %v1734
      %v1736 = vpop.f32.mrb[0].mxu0
      %1737 = vdwg.mxu0
      %v1738 = vld [vmem:[%s10] sm:$0x1]
      %v1740 = vlaneseq
      %v1741 = vshrl.u32 %v1740, 7
      %v1742 = vsub.s32 0, %v1741
      %v1743 = vrot.slane %v1738, %v1742
      %v1745 = vadd.f32 %v1660, %v1743
      %v1746 = vadd.f32 %v1665, %v1743
      %v1747 = vadd.f32 %v1670, %v1743
      %v1748 = vadd.f32 %v1675, %v1743
      %v1749 = vadd.f32 %v1680, %v1743
      %v1750 = vadd.f32 %v1685, %v1743
      %v1751 = vadd.f32 %v1690, %v1743
      %v1752 = vadd.f32 %v1695, %v1743
      %v1753 = vadd.f32 %v1700, %v1743
      %v1754 = vadd.f32 %v1705, %v1743
      %v1755 = vadd.f32 %v1710, %v1743
      %v1756 = vadd.f32 %v1715, %v1743
      %v1757 = vadd.f32 %v1720, %v1743
      %v1758 = vadd.f32 %v1725, %v1743
      %v1759 = vadd.f32 %v1730, %v1743
      %v1760 = vadd.f32 %v1735, %v1743
      %v1761 = vmax.f32 %v1745, 0.0
      %v1762 = vmax.f32 %v1746, 0.0
      %v1763 = vmax.f32 %v1747, 0.0
      %v1764 = vmax.f32 %v1748, 0.0
      %v1765 = vmax.f32 %v1749, 0.0
      %v1766 = vmax.f32 %v1750, 0.0
      %v1767 = vmax.f32 %v1751, 0.0
      %v1768 = vmax.f32 %v1752, 0.0
      %v1769 = vmax.f32 %v1753, 0.0
      %v1770 = vmax.f32 %v1754, 0.0
      %v1771 = vmax.f32 %v1755, 0.0
      %v1772 = vmax.f32 %v1756, 0.0
      %v1773 = vmax.f32 %v1757, 0.0
      %v1774 = vmax.f32 %v1758, 0.0
      %v1775 = vmax.f32 %v1759, 0.0
      %v1776 = vmax.f32 %v1760, 0.0
      %v1777 = vld [vmem:[#allocation15] sm:$0xff]
      %v1778 = vld [vmem:[#allocation15 + $0x8] sm:$0xff]
      %v1779 = vld [vmem:[#allocation15 + $0x10] sm:$0xff]
      %v1780 = vld [vmem:[#allocation15 + $0x18] sm:$0xff]
      %v1781 = vld [vmem:[#allocation15 + $0x20] sm:$0xff]
      %v1782 = vld [vmem:[#allocation15 + $0x28] sm:$0xff]
      %v1783 = vld [vmem:[#allocation15 + $0x30] sm:$0xff]
      %v1784 = vld [vmem:[#allocation15 + $0x38] sm:$0xff]
      %v1785 = vld [vmem:[#allocation15 + $0x40] sm:$0xff]
      %v1786 = vld [vmem:[#allocation15 + $0x48] sm:$0xff]
      %v1787 = vld [vmem:[#allocation15 + $0x50] sm:$0xff]
      %v1788 = vld [vmem:[#allocation15 + $0x58] sm:$0xff]
      %v1789 = vld [vmem:[#allocation15 + $0x60] sm:$0xff]
      %v1790 = vld [vmem:[#allocation15 + $0x68] sm:$0xff]
      %v1791 = vld [vmem:[#allocation15 + $0x70] sm:$0xff]
      %v1792 = vld [vmem:[#allocation15 + $0x78] sm:$0xff]
      %v1793 = vld [vmem:[%s12] sm:$0x1]
      %v1795 = vlaneseq
      %v1796 = vshrl.u32 %v1795, 7
      %v1797 = vsub.s32 0, %v1796
      %v1798 = vrot.slane %v1793, %v1797
      %1800 = vmatprep.subr.mxu0 0.0
      %1801 = vmatpush1.msra.mxu0 %v1777
      %1802 = vmatprep.subr.mxu0 0.0
      %1803 = vmatpush1.msra.mxu0 %v1778
      %1804 = vmatprep.subr.mxu0 0.0
      %1805 = vmatpush1.msra.mxu0 %v1779
      %1806 = vmatprep.subr.mxu0 0.0
      %1807 = vmatpush1.msra.mxu0 %v1780
      %1808 = vmatprep.subr.mxu0 0.0
      %1809 = vmatpush1.msra.mxu0 %v1781
      %1810 = vmatprep.subr.mxu0 0.0
      %1811 = vmatpush1.msra.mxu0 %v1782
      %1812 = vmatprep.subr.mxu0 0.0
      %1813 = vmatpush1.msra.mxu0 %v1783
      %1814 = vmatprep.subr.mxu0 0.0
      %1815 = vmatpush1.msra.mxu0 %v1784
      %1816 = vmatprep.subr.mxu0 0.0
      %1817 = vmatpush1.msra.mxu0 %v1785
      %1818 = vmatprep.subr.mxu0 0.0
      %1819 = vmatpush1.msra.mxu0 %v1786
      %1820 = vmatprep.subr.mxu0 0.0
      %1821 = vmatpush1.msra.mxu0 %v1787
      %1822 = vmatprep.subr.mxu0 0.0
      %1823 = vmatpush1.msra.mxu0 %v1788
      %1824 = vmatprep.subr.mxu0 0.0
      %1825 = vmatpush1.msra.mxu0 %v1789
      %1826 = vmatprep.subr.mxu0 0.0
      %1827 = vmatpush1.msra.mxu0 %v1790
      %1828 = vmatprep.subr.mxu0 0.0
      %1829 = vmatpush1.msra.mxu0 %v1791
      %1830 = vmatprep.subr.mxu0 0.0
      %1831 = vmatpush1.msra.mxu0 %v1792
      %1832 = vmatprep.subr.mxu0 0.0
      %1833 = vmatpush1.msra.mxu0 0.0
      %1834 = vmatprep.subr.mxu0 0.0
      %1835 = vmatpush1.msra.mxu0 0.0
      %1836 = vmatprep.subr.mxu0 0.0
      %1837 = vmatpush1.msra.mxu0 0.0
      %1838 = vmatprep.subr.mxu0 0.0
      %1839 = vmatpush1.msra.mxu0 0.0
      %1840 = vmatprep.subr.mxu0 0.0
      %1841 = vmatpush1.msra.mxu0 0.0
      %1842 = vmatprep.subr.mxu0 0.0
      %1843 = vmatpush1.msra.mxu0 0.0
      %1844 = vmatprep.subr.mxu0 0.0
      %1845 = vmatpush1.msra.mxu0 0.0
      %1846 = vmatprep.subr.mxu0 0.0
      %1847 = vmatpush1.msra.mxu0 0.0
      %1848 = vmatprep.subr.mxu0 0.0
      %1849 = vmatpush1.msra.mxu0 0.0
      %1850 = vmatprep.subr.mxu0 0.0
      %1851 = vmatpush1.msra.mxu0 0.0
      %1852 = vmatprep.subr.mxu0 0.0
      %1853 = vmatpush1.msra.mxu0 0.0
      %1854 = vmatprep.subr.mxu0 0.0
      %1855 = vmatpush1.msra.mxu0 0.0
      %1856 = vmatprep.subr.mxu0 0.0
      %1857 = vmatpush1.msra.mxu0 0.0
      %1858 = vmatprep.subr.mxu0 0.0
      %1859 = vmatpush1.msra.mxu0 0.0
      %1860 = vmatprep.subr.mxu0 0.0
      %1861 = vmatpush1.msra.mxu0 0.0
      %1862 = vmatprep.subr.mxu0 0.0
      %1863 = vmatpush1.msra.mxu0 0.0
      %1864 = vmatprep.mubr.f32.mxu0 0.0
      %1865 = vmatmul.mubr.f32.gmra.mrb[0].mxu0 %v1761
      %v1866 = vpop.f32.mrb[0].mxu0
      %v1867 = vadd.f32 %v1798, %v1866
      %v1868 = vpop.f32.mrb[0].mxu0
      %1869 = vmatprep.mubr.f32.mxu0 0.0
      %1870 = vmatmul.mubr.f32.gmra.mrb[0].mxu0 %v1762
      %v1871 = vpop.f32.mrb[0].mxu0
      %v1872 = vadd.f32 %v1798, %v1871
      %v1873 = vpop.f32.mrb[0].mxu0
      %1874 = vmatprep.mubr.f32.mxu0 0.0
      %1875 = vmatmul.mubr.f32.gmra.mrb[0].mxu0 %v1763
      %v1876 = vpop.f32.mrb[0].mxu0
      %v1877 = vadd.f32 %v1798, %v1876
      %v1878 = vpop.f32.mrb[0].mxu0
      %1879 = vmatprep.mubr.f32.mxu0 0.0
      %1880 = vmatmul.mubr.f32.gmra.mrb[0].mxu0 %v1764
      %v1881 = vpop.f32.mrb[0].mxu0
      %v1882 = vadd.f32 %v1798, %v1881
      %v1883 = vpop.f32.mrb[0].mxu0
      %1884 = vmatprep.mubr.f32.mxu0 0.0
      %1885 = vmatmul.mubr.f32.gmra.mrb[0].mxu0 %v1765
      %v1886 = vpop.f32.mrb[0].mxu0
      %v1887 = vadd.f32 %v1798, %v1886
      %v1888 = vpop.f32.mrb[0].mxu0
      %1889 = vmatprep.mubr.f32.mxu0 0.0
      %1890 = vmatmul.mubr.f32.gmra.mrb[0].mxu0 %v1766
      %v1891 = vpop.f32.mrb[0].mxu0
      %v1892 = vadd.f32 %v1798, %v1891
      %v1893 = vpop.f32.mrb[0].mxu0
      %1894 = vmatprep.mubr.f32.mxu0 0.0
      %1895 = vmatmul.mubr.f32.gmra.mrb[0].mxu0 %v1767
      %v1896 = vpop.f32.mrb[0].mxu0
      %v1897 = vadd.f32 %v1798, %v1896
      %v1898 = vpop.f32.mrb[0].mxu0
      %1899 = vmatprep.mubr.f32.mxu0 0.0
      %1900 = vmatmul.mubr.f32.gmra.mrb[0].mxu0 %v1768
      %v1901 = vpop.f32.mrb[0].mxu0
      %v1902 = vadd.f32 %v1798, %v1901
      %v1903 = vpop.f32.mrb[0].mxu0
      %1904 = vmatprep.mubr.f32.mxu0 0.0
      %1905 = vmatmul.mubr.f32.gmra.mrb[0].mxu0 %v1769
      %v1906 = vpop.f32.mrb[0].mxu0
      %v1907 = vadd.f32 %v1798, %v1906
      %v1908 = vpop.f32.mrb[0].mxu0
      %1909 = vmatprep.mubr.f32.mxu0 0.0
      %1910 = vmatmul.mubr.f32.gmra.mrb[0].mxu0 %v1770
      %v1911 = vpop.f32.mrb[0].mxu0
      %v1912 = vadd.f32 %v1798, %v1911
      %v1913 = vpop.f32.mrb[0].mxu0
      %1914 = vmatprep.mubr.f32.mxu0 0.0
      %1915 = vmatmul.mubr.f32.gmra.mrb[0].mxu0 %v1771
      %v1916 = vpop.f32.mrb[0].mxu0
      %v1917 = vadd.f32 %v1798, %v1916
      %v1918 = vpop.f32.mrb[0].mxu0
      %1919 = vmatprep.mubr.f32.mxu0 0.0
      %1920 = vmatmul.mubr.f32.gmra.mrb[0].mxu0 %v1772
      %v1921 = vpop.f32.mrb[0].mxu0
      %v1922 = vadd.f32 %v1798, %v1921
      %v1923 = vpop.f32.mrb[0].mxu0
      %1924 = vmatprep.mubr.f32.mxu0 0.0
      %1925 = vmatmul.mubr.f32.gmra.mrb[0].mxu0 %v1773
      %v1926 = vpop.f32.mrb[0].mxu0
      %v1927 = vadd.f32 %v1798, %v1926
      %v1928 = vpop.f32.mrb[0].mxu0
      %1929 = vmatprep.mubr.f32.mxu0 0.0
      %1930 = vmatmul.mubr.f32.gmra.mrb[0].mxu0 %v1774
      %v1931 = vpop.f32.mrb[0].mxu0
      %v1932 = vadd.f32 %v1798, %v1931
      %v1933 = vpop.f32.mrb[0].mxu0
      %1934 = vmatprep.mubr.f32.mxu0 0.0
      %1935 = vmatmul.mubr.f32.gmra.mrb[0].mxu0 %v1775
      %v1936 = vpop.f32.mrb[0].mxu0
      %v1937 = vadd.f32 %v1798, %v1936
      %v1938 = vpop.f32.mrb[0].mxu0
      %1939 = vmatprep.mubr.f32.mxu0 0.0
      %1940 = vmatmul.mubr.f32.gmra.mrb[0].mxu0 %v1776
      %v1941 = vpop.f32.mrb[0].mxu0
      %v1942 = vadd.f32 %v1798, %v1941
      %v1943 = vpop.f32.mrb[0].mxu0
      %1944 = vdwg.mxu0
      %1945 = vst [vmem:[#allocation19] sm:$0xff] %v1867
      %1946 = vst [vmem:[#allocation19 + $0x8] sm:$0xff] %v1872
      %1947 = vst [vmem:[#allocation19 + $0x10] sm:$0xff] %v1877
      %1948 = vst [vmem:[#allocation19 + $0x18] sm:$0xff] %v1882
      %1949 = vst [vmem:[#allocation19 + $0x20] sm:$0xff] %v1887
      %1950 = vst [vmem:[#allocation19 + $0x28] sm:$0xff] %v1892
      %1951 = vst [vmem:[#allocation19 + $0x30] sm:$0xff] %v1897
      %1952 = vst [vmem:[#allocation19 + $0x38] sm:$0xff] %v1902
      %1953 = vst [vmem:[#allocation19 + $0x40] sm:$0xff] %v1907
      %1954 = vst [vmem:[#allocation19 + $0x48] sm:$0xff] %v1912
      %1955 = vst [vmem:[#allocation19 + $0x50] sm:$0xff] %v1917
      %1956 = vst [vmem:[#allocation19 + $0x58] sm:$0xff] %v1922
      %1957 = vst [vmem:[#allocation19 + $0x60] sm:$0xff] %v1927
      %1958 = vst [vmem:[#allocation19 + $0x68] sm:$0xff] %v1932
      %1959 = vst [vmem:[#allocation19 + $0x70] sm:$0xff] %v1937
      %1960 = vst [vmem:[#allocation19 + $0x78] sm:$0xff] %v1942
    $region93: #{tpu_custom_call.1} parent=1 // pred_fallthru
      _
    // Predicated region
    $region94: #{tpu_custom_call.1} parent=1 // pred_check
      _
    $region95: #{tpu_custom_call.1} parent=1 // pred_check_branch
      %1962 = sbr.rel (0) target = $region97
    $region96: #{tpu_custom_call.1} parent=1 // pred_region
      %s1964 = ssub.s32 2048, 2048
      %1965 = vsyncadd [#allocation6], %s1964
      %s1966 = sshll.u32 [#allocation16], 4
      %s1967 = int_to_ptr.vmem [resolvable:$true] %s1966
      %1972 = dma.vmem_to_hbm [thread:$0]  %s1967, 2048, %s13, [#allocation6], 128, 128, 8
    $region97: #{tpu_custom_call.1} parent=1 // pred_fallthru
      _
    // Predicated region
    $region98: #{tpu_custom_call.1} parent=1 // pred_check
      _
    $region99: #{tpu_custom_call.1} parent=1 // pred_check_branch
      %1974 = sbr.rel (0) target = $region101
    $region100: #{tpu_custom_call.1} parent=1 // pred_region
      %s1976 = ssub.s32 2048, 2048
      %1977 = vsyncadd [#allocation18], %s1976
      %s1978 = sshll.u32 [#allocation17], 4
      %s1979 = int_to_ptr.vmem [resolvable:$true] %s1978
      %1984 = dma.vmem_to_hbm [thread:$0]  %s1979, 2048, %s14, [#allocation18], 128, 128, 8
    $region101: #{tpu_custom_call.1} parent=1 // pred_fallthru
      _
    // Predicated region
    $region102: #{tpu_custom_call.1} parent=1 // pred_check
      _
    $region103: #{tpu_custom_call.1} parent=1 // pred_check_branch
      %1986 = sbr.rel (0) target = $region105
    $region104: #{tpu_custom_call.1} parent=1 // pred_region
      %s1988 = ssub.s32 2048, 2048
      %1989 = vsyncadd [#allocation18], %s1988
      %s1990 = sshll.u32 [#allocation19], 4
      %s1991 = int_to_ptr.vmem [resolvable:$true] %s1990
      %1996 = dma.vmem_to_hbm [thread:$0]  %s1991, 2048, %s15, [#allocation18], 128, 128, 8
    $region105: #{tpu_custom_call.1} parent=1 // pred_fallthru
      _
    // Predicated region
    $region106: #{tpu_custom_call.1} parent=1 // pred_check
      _
    $region107: #{tpu_custom_call.1} parent=1 // pred_check_branch
      %1998 = sbr.rel (0) target = $region109
    $region108: #{tpu_custom_call.1} parent=1 // pred_region
      %1999 = dma.done [#allocation6], 2048
    $region109: #{tpu_custom_call.1} parent=1 // pred_fallthru
      _
    // Predicated region
    $region110: #{tpu_custom_call.1} parent=1 // pred_check
      _
    $region111: #{tpu_custom_call.1} parent=1 // pred_check_branch
      %2001 = sbr.rel (0) target = $region113
    $region112: #{tpu_custom_call.1} parent=1 // pred_region
      %2002 = dma.done [#allocation18], 2048
    $region113: #{tpu_custom_call.1} parent=1 // pred_fallthru
      _
    // Predicated region
    $region114: #{tpu_custom_call.1} parent=1 // pred_check
      _
    $region115: #{tpu_custom_call.1} parent=1 // pred_check_branch
      %2004 = sbr.rel (0) target = $region117
    $region116: #{tpu_custom_call.1} parent=1 // pred_region
      %2005 = dma.done [#allocation18], 2048
    $region117: #{tpu_custom_call.1} parent=1 // pred_fallthru
      _
    %2006 = vsyncpa [#allocation5], 1
    %2007 = vsyncpa [#allocation8], 1
    %2008 = vsyncpa [#allocation11], 1
    %2009 = vsyncpa [#allocation14], 1
    %2010 = vsyncpa [#allocation6], 1
    %2011 = vsyncpa [#allocation18], 1

</llo_original>
